<compile_context>
chip_gen: v5e
topology: v5e:2x2
jax: 0.10.0
libtpu: 0.0.40
codegen_flags: <defaults>
</compile_context>

<pallas_src>
import functools
import math

import jax
import jax.numpy as jnp
from jax.experimental import pallas as pl
from jax.experimental.pallas import tpu as pltpu  # noqa: F401  (TPU backend)

# ------------------------- model hyper-parameters -------------------------
D_MODEL = 32
NHEAD = 4
DIM_FF = 64
NUM_LAYERS = 2
EPS = 1e-5

# TODO(synk): the repo's custom TransformerEncoderLayer class is not shown in
# the spec; standard nn.TransformerEncoderLayer (post-norm, ReLU FFN) forward
# semantics are implemented here, with dropout treated as identity.


def _layer_norm(y, g, b, eps):
    mu = jnp.mean(y, axis=-1, keepdims=True)
    var = jnp.mean(jnp.square(y - mu), axis=-1, keepdims=True)
    return (y - mu) * jax.lax.rsqrt(var + eps) * g + b


# ------------------------------ fused kernel -------------------------------


def _encoder_stack_kernel(x_ref, wqkv_ref, bqkv_ref, wo_ref, bo_ref,
                          w1_ref, b1_ref, w2_ref, b2_ref,
                          ln1_ref, ln2_ref, lnf_ref, o_ref,
                          *, num_layers, nhead, seq, batch, eps):
    """Whole encoder stack for the whole batch in one kernel.

    x_ref: (M, E) with rows ordered (s, n), M = seq*batch.  All weight refs
    carry a leading layer axis.  Output: (M, E).
    """
    m = seq * batch
    e = x_ref.shape[-1]
    dh = e // nhead
    scale = 1.0 / math.sqrt(dh)

    # Tokens may only attend within their own batch element.  Rows/cols are
    # ordered (s, n) => batch id = index % batch.  Built from iota in-kernel,
    # so no mask operand is DMA'd from HBM.
    row_b = jax.lax.broadcasted_iota(jnp.int32, (m, m), 0) % batch
    col_b = jax.lax.broadcasted_iota(jnp.int32, (m, m), 1) % batch
    xbatch_mask = jnp.where(row_b == col_b, 0.0, -1e30).astype(jnp.float32)

    x = x_ref[...]                                        # (M, E)

    for l in range(num_layers):                           # static layer loop
        # ---------------- self-attention (fused QKV projection) -----------
        qkv = jnp.dot(x, wqkv_ref[l],
                      preferred_element_type=jnp.float32) + bqkv_ref[l]
        wo = wo_ref[l]                                    # (E, E)
        acc = jnp.zeros((m, e), jnp.float32)
        for h in range(nhead):                            # static head loop
            lo = h * dh
            qh = qkv[:, lo:lo + dh]                       # (M, dh)
            kh = qkv[:, e + lo:e + lo + dh]               # (M, dh)
            vh = qkv[:, 2 * e + lo:2 * e + lo + dh]       # (M, dh)
            s = jax.lax.dot_general(
                qh, kh, (((1,), (1,)), ((), ())),         # q @ k.T
                preferred_element_type=jnp.float32) * scale
            s = s + xbatch_mask
            s = s - jnp.max(s, axis=-1, keepdims=True)
            p = jnp.exp(s)
            p = p / jnp.sum(p, axis=-1, keepdims=True)
            oh = jnp.dot(p, vh, preferred_element_type=jnp.float32)
            # concat(heads) @ Wo  ==  sum_h  oh @ Wo[h*dh:(h+1)*dh, :]
            acc = acc + jnp.dot(oh, wo[lo:lo + dh, :],
                                preferred_element_type=jnp.float32)
        attn = acc + bo_ref[l]

        ln1 = ln1_ref[l]                                  # (2, E)
        x = _layer_norm(x + attn, ln1[0:1, :], ln1[1:2, :], eps)

        # ---------------------------- FFN ----------------------------------
        hid = jnp.dot(x, w1_ref[l],
                      preferred_element_type=jnp.float32) + b1_ref[l]
        hid = jnp.maximum(hid, 0.0)
        ff = jnp.dot(hid, w2_ref[l],
                     preferred_element_type=jnp.float32) + b2_ref[l]

        ln2 = ln2_ref[l]
        x = _layer_norm(x + ff, ln2[0:1, :], ln2[1:2, :], eps)

    # final stack norm (LayerNorm)
    lnf = lnf_ref[...]                                    # (2, E)
    x = _layer_norm(x, lnf[0:1, :], lnf[1:2, :], eps)
    o_ref[...] = x


# ------------------------------ pallas wrapper ------------------------------


def transformer_encoder_forward(params, src):
    """src: (S, N, E) with batch_first=False.  Returns (S, N, E)."""
    s, n, e = src.shape
    x2d = src.reshape(s * n, e)          # contiguous -> free reshape in XLA

    kern = functools.partial(
        _encoder_stack_kernel,
        num_layers=NUM_LAYERS, nhead=NHEAD, seq=s, batch=n, eps=EPS)

    out2d = pl.pallas_call(
        kern,
        out_shape=jax.ShapeDtypeStruct((s * n, e), jnp.float32),
        # No grid: every operand is a single whole-array VMEM block.
    )(x2d,
      params["wqkv"], params["bqkv"], params["wo"], params["bo"],
      params["w1"], params["b1"], params["w2"], params["b2"],
      params["ln1"], params["ln2"], params["lnf"])

    return out2d.reshape(s, n, e)


# --------------------------- parameter creation ----------------------------


def _xavier(key, shape):
    fan_in, fan_out = shape[-2], shape[-1]
    limit = math.sqrt(6.0 / (fan_in + fan_out))
    return jax.random.uniform(key, shape, jnp.float32, -limit, limit)


def init_encoder_params(key, num_layers=NUM_LAYERS, e=D_MODEL, f=DIM_FF):
    keys = jax.random.split(key, num_layers * 4)
    wqkv, wo, w1, w2 = [], [], [], []
    for i in range(num_layers):
        k0, k1, k2, k3 = keys[4 * i:4 * i + 4]
        wqkv.append(_xavier(k0, (e, 3 * e)))
        wo.append(_xavier(k1, (e, e)))
        w1.append(_xavier(k2, (e, f)))
        w2.append(_xavier(k3, (f, e)))
    ln_gb = jnp.stack([jnp.ones((e,), jnp.float32),
                       jnp.zeros((e,), jnp.float32)])          # (2, E)
    return {
        "wqkv": jnp.stack(wqkv),                               # (L, E, 3E)
        "bqkv": jnp.zeros((num_layers, 1, 3 * e), jnp.float32),
        "wo": jnp.stack(wo),                                   # (L, E, E)
        "bo": jnp.zeros((num_layers, 1, e), jnp.float32),
        "w1": jnp.stack(w1),                                   # (L, E, F)
        "b1": jnp.zeros((num_layers, 1, f), jnp.float32),
        "w2": jnp.stack(w2),                                   # (L, F, E)
        "b2": jnp.zeros((num_layers, 1, e), jnp.float32),
        "ln1": jnp.tile(ln_gb[None], (num_layers, 1, 1)),      # (L, 2, E)
        "ln2": jnp.tile(ln_gb[None], (num_layers, 1, 1)),      # (L, 2, E)
        "lnf": ln_gb,                                          # (2, E)
    }


# ----------------------------------- main -----------------------------------

if __name__ == "__main__":
    key = jax.random.PRNGKey(0)
    kp, ks = jax.random.split(key)

    params = init_encoder_params(kp)

    S, N = 8, 2
    src = jax.random.normal(ks, (S, N, D_MODEL), jnp.float32)   # (S, N, E)

    out = jax.jit(transformer_encoder_forward)(params, src)
    jax.block_until_ready(out)

    assert out.shape == (S, N, D_MODEL)
    assert bool(jnp.all(jnp.isfinite(out)))
    print("KERNEL_OK")
</pallas_src>

<mosaic_0001>
module attributes {stable_mosaic.version = 11 : i64} {
  func.func @_encoder_stack_kernel(%arg0: memref<16x32xf32, #tpu.memory_space<vmem>>, %arg1: memref<2x32x96xf32, #tpu.memory_space<vmem>>, %arg2: memref<2x1x96xf32, #tpu.memory_space<vmem>>, %arg3: memref<2x32x32xf32, #tpu.memory_space<vmem>>, %arg4: memref<2x1x32xf32, #tpu.memory_space<vmem>>, %arg5: memref<2x32x64xf32, #tpu.memory_space<vmem>>, %arg6: memref<2x1x64xf32, #tpu.memory_space<vmem>>, %arg7: memref<2x64x32xf32, #tpu.memory_space<vmem>>, %arg8: memref<2x1x32xf32, #tpu.memory_space<vmem>>, %arg9: memref<2x2x32xf32, #tpu.memory_space<vmem>>, %arg10: memref<2x2x32xf32, #tpu.memory_space<vmem>>, %arg11: memref<2x32xf32, #tpu.memory_space<vmem>>, %arg12: memref<16x32xf32, #tpu.memory_space<vmem>>) attributes {dimension_semantics = [], scalar_prefetch = 0 : i64, scratch_operands = 0 : i64, tpu.core_type = #tpu.core_type<tc>} {
    %0 = tpu.iota {dimensions = array<i32: 0>} : vector<16x16xi32>
    %c2_i32 = arith.constant 2 : i32
    %c0_i32 = arith.constant 0 : i32
    %1 = arith.cmpi eq, %c2_i32, %c0_i32 : i32
    %c1_i32 = arith.constant 1 : i32
    %2 = arith.select %1, %c1_i32, %c2_i32 : i32
    %3 = vector.broadcast %2 : i32 to vector<16x16xi32>
    %4 = arith.remsi %0, %3 : vector<16x16xi32>
    %c0_i32_0 = arith.constant 0 : i32
    %5 = vector.broadcast %c0_i32_0 : i32 to vector<16x16xi32>
    %6 = arith.cmpi ne, %4, %5 : vector<16x16xi32>
    %c0_i32_1 = arith.constant 0 : i32
    %7 = vector.broadcast %c0_i32_1 : i32 to vector<16x16xi32>
    %8 = arith.cmpi slt, %4, %7 : vector<16x16xi32>
    %c0_i32_2 = arith.constant 0 : i32
    %9 = arith.cmpi slt, %2, %c0_i32_2 : i32
    %10 = vector.broadcast %9 : i1 to vector<16x16xi1>
    %11 = vector.broadcast %10 : vector<16x16xi1> to vector<16x16xi1>
    %12 = arith.xori %8, %11 : vector<16x16xi1>
    %13 = arith.andi %12, %6 : vector<16x16xi1>
    %14 = vector.broadcast %2 : i32 to vector<16x16xi32>
    %15 = arith.addi %4, %14 : vector<16x16xi32>
    %16 = arith.select %13, %15, %4 : vector<16x16xi1>, vector<16x16xi32>
    %17 = tpu.iota {dimensions = array<i32: 1>} : vector<16x16xi32>
    %c2_i32_3 = arith.constant 2 : i32
    %c0_i32_4 = arith.constant 0 : i32
    %18 = arith.cmpi eq, %c2_i32_3, %c0_i32_4 : i32
    %c1_i32_5 = arith.constant 1 : i32
    %19 = arith.select %18, %c1_i32_5, %c2_i32_3 : i32
    %20 = vector.broadcast %19 : i32 to vector<16x16xi32>
    %21 = arith.remsi %17, %20 : vector<16x16xi32>
    %c0_i32_6 = arith.constant 0 : i32
    %22 = vector.broadcast %c0_i32_6 : i32 to vector<16x16xi32>
    %23 = arith.cmpi ne, %21, %22 : vector<16x16xi32>
    %c0_i32_7 = arith.constant 0 : i32
    %24 = vector.broadcast %c0_i32_7 : i32 to vector<16x16xi32>
    %25 = arith.cmpi slt, %21, %24 : vector<16x16xi32>
    %c0_i32_8 = arith.constant 0 : i32
    %26 = arith.cmpi slt, %19, %c0_i32_8 : i32
    %27 = vector.broadcast %26 : i1 to vector<16x16xi1>
    %28 = vector.broadcast %27 : vector<16x16xi1> to vector<16x16xi1>
    %29 = arith.xori %25, %28 : vector<16x16xi1>
    %30 = arith.andi %29, %23 : vector<16x16xi1>
    %31 = vector.broadcast %19 : i32 to vector<16x16xi32>
    %32 = arith.addi %21, %31 : vector<16x16xi32>
    %33 = arith.select %30, %32, %21 : vector<16x16xi1>, vector<16x16xi32>
    %34 = arith.cmpi eq, %16, %33 : vector<16x16xi32>
    %cst = arith.constant 0.000000e+00 : f32
    %cst_9 = arith.constant -1.000000e+30 : f32
    %35 = vector.broadcast %cst : f32 to vector<16x16xf32>
    %36 = vector.broadcast %cst_9 : f32 to vector<16x16xf32>
    %37 = arith.select %34, %35, %36 : vector<16x16xi1>, vector<16x16xf32>
    %c0 = arith.constant 0 : index
    %c0_10 = arith.constant 0 : index
    %38 = vector.load %arg0[%c0, %c0_10] : memref<16x32xf32, #tpu.memory_space<vmem>>, vector<16x32xf32>
    %c0_11 = arith.constant 0 : index
    %c0_12 = arith.constant 0 : index
    %c0_13 = arith.constant 0 : index
    %39 = vector.load %arg1[%c0_11, %c0_12, %c0_13] : memref<2x32x96xf32, #tpu.memory_space<vmem>>, vector<1x32x96xf32>
    %40 = vector.shape_cast %39 : vector<1x32x96xf32> to vector<32x96xf32>
    %cst_14 = arith.constant dense<0.000000e+00> : vector<16x96xf32>
    %41 = tpu.matmul %38, %40, %cst_14 {dimension_numbers = #tpu.dot_dimension_numbers<[1], [0], [0], [1], [0, 0, 1, 1], [], []>} : vector<16x32xf32>, vector<32x96xf32>, vector<16x96xf32> -> vector<16x96xf32>
    %c0_15 = arith.constant 0 : index
    %c0_16 = arith.constant 0 : index
    %c0_17 = arith.constant 0 : index
    %42 = vector.load %arg2[%c0_15, %c0_16, %c0_17] : memref<2x1x96xf32, #tpu.memory_space<vmem>>, vector<1x1x96xf32>
    %43 = vector.shape_cast %42 : vector<1x1x96xf32> to vector<1x96xf32>
    %44 = vector.broadcast %43 : vector<1x96xf32> to vector<16x96xf32>
    %45 = arith.addf %41, %44 : vector<16x96xf32>
    %c0_18 = arith.constant 0 : index
    %c0_19 = arith.constant 0 : index
    %c0_20 = arith.constant 0 : index
    %46 = vector.load %arg3[%c0_18, %c0_19, %c0_20] : memref<2x32x32xf32, #tpu.memory_space<vmem>>, vector<1x32x32xf32>
    %47 = vector.shape_cast %46 : vector<1x32x32xf32> to vector<32x32xf32>
    %cst_21 = arith.constant 0.000000e+00 : f32
    %48 = vector.broadcast %cst_21 : f32 to vector<16x32xf32>
    %49 = vector.extract_strided_slice %45 {offsets = [0, 0], sizes = [16, 8], strides = [1, 1]} : vector<16x96xf32> to vector<16x8xf32>
    %50 = vector.extract_strided_slice %45 {offsets = [0, 32], sizes = [16, 8], strides = [1, 1]} : vector<16x96xf32> to vector<16x8xf32>
    %51 = vector.extract_strided_slice %45 {offsets = [0, 64], sizes = [16, 8], strides = [1, 1]} : vector<16x96xf32> to vector<16x8xf32>
    %cst_22 = arith.constant dense<0.000000e+00> : vector<16x16xf32>
    %52 = tpu.matmul %49, %50, %cst_22 {dimension_numbers = #tpu.dot_dimension_numbers<[1], [1], [0], [0], [0, 0, 1, 0], [], []>} : vector<16x8xf32>, vector<16x8xf32>, vector<16x16xf32> -> vector<16x16xf32>
    %cst_23 = arith.constant 0.353553385 : f32
    %53 = vector.broadcast %cst_23 : f32 to vector<16x16xf32>
    %54 = arith.mulf %52, %53 : vector<16x16xf32>
    %55 = arith.addf %54, %37 : vector<16x16xf32>
    %cst_24 = arith.constant dense<0xFF800000> : vector<16xf32>
    %56 = vector.multi_reduction <maximumf>, %55, %cst_24 [1] : vector<16x16xf32> to vector<16xf32>
    %57 = vector.shape_cast %56 : vector<16xf32> to vector<16x1xf32>
    %58 = vector.broadcast %57 : vector<16x1xf32> to vector<16x16xf32>
    %59 = arith.subf %55, %58 : vector<16x16xf32>
    %60 = math.exp %59 : vector<16x16xf32>
    %cst_25 = arith.constant dense<0.000000e+00> : vector<16xf32>
    %61 = vector.multi_reduction <add>, %60, %cst_25 [1] : vector<16x16xf32> to vector<16xf32>
    %62 = vector.shape_cast %61 : vector<16xf32> to vector<16x1xf32>
    %63 = vector.broadcast %62 : vector<16x1xf32> to vector<16x16xf32>
    %64 = arith.divf %60, %63 : vector<16x16xf32>
    %cst_26 = arith.constant dense<0.000000e+00> : vector<16x8xf32>
    %65 = tpu.matmul %64, %51, %cst_26 {dimension_numbers = #tpu.dot_dimension_numbers<[1], [0], [0], [1], [0, 0, 1, 1], [], []>} : vector<16x16xf32>, vector<16x8xf32>, vector<16x8xf32> -> vector<16x8xf32>
    %66 = vector.extract_strided_slice %47 {offsets = [0, 0], sizes = [8, 32], strides = [1, 1]} : vector<32x32xf32> to vector<8x32xf32>
    %cst_27 = arith.constant dense<0.000000e+00> : vector<16x32xf32>
    %67 = tpu.matmul %65, %66, %cst_27 {dimension_numbers = #tpu.dot_dimension_numbers<[1], [0], [0], [1], [0, 0, 1, 1], [], []>} : vector<16x8xf32>, vector<8x32xf32>, vector<16x32xf32> -> vector<16x32xf32>
    %68 = arith.addf %48, %67 : vector<16x32xf32>
    %69 = vector.extract_strided_slice %45 {offsets = [0, 8], sizes = [16, 8], strides = [1, 1]} : vector<16x96xf32> to vector<16x8xf32>
    %70 = vector.extract_strided_slice %45 {offsets = [0, 40], sizes = [16, 8], strides = [1, 1]} : vector<16x96xf32> to vector<16x8xf32>
    %71 = vector.extract_strided_slice %45 {offsets = [0, 72], sizes = [16, 8], strides = [1, 1]} : vector<16x96xf32> to vector<16x8xf32>
    %cst_28 = arith.constant dense<0.000000e+00> : vector<16x16xf32>
    %72 = tpu.matmul %69, %70, %cst_28 {dimension_numbers = #tpu.dot_dimension_numbers<[1], [1], [0], [0], [0, 0, 1, 0], [], []>} : vector<16x8xf32>, vector<16x8xf32>, vector<16x16xf32> -> vector<16x16xf32>
    %cst_29 = arith.constant 0.353553385 : f32
    %73 = vector.broadcast %cst_29 : f32 to vector<16x16xf32>
    %74 = arith.mulf %72, %73 : vector<16x16xf32>
    %75 = arith.addf %74, %37 : vector<16x16xf32>
    %cst_30 = arith.constant dense<0xFF800000> : vector<16xf32>
    %76 = vector.multi_reduction <maximumf>, %75, %cst_30 [1] : vector<16x16xf32> to vector<16xf32>
    %77 = vector.shape_cast %76 : vector<16xf32> to vector<16x1xf32>
    %78 = vector.broadcast %77 : vector<16x1xf32> to vector<16x16xf32>
    %79 = arith.subf %75, %78 : vector<16x16xf32>
    %80 = math.exp %79 : vector<16x16xf32>
    %cst_31 = arith.constant dense<0.000000e+00> : vector<16xf32>
    %81 = vector.multi_reduction <add>, %80, %cst_31 [1] : vector<16x16xf32> to vector<16xf32>
    %82 = vector.shape_cast %81 : vector<16xf32> to vector<16x1xf32>
    %83 = vector.broadcast %82 : vector<16x1xf32> to vector<16x16xf32>
    %84 = arith.divf %80, %83 : vector<16x16xf32>
    %cst_32 = arith.constant dense<0.000000e+00> : vector<16x8xf32>
    %85 = tpu.matmul %84, %71, %cst_32 {dimension_numbers = #tpu.dot_dimension_numbers<[1], [0], [0], [1], [0, 0, 1, 1], [], []>} : vector<16x16xf32>, vector<16x8xf32>, vector<16x8xf32> -> vector<16x8xf32>
    %86 = vector.extract_strided_slice %47 {offsets = [8, 0], sizes = [8, 32], strides = [1, 1]} : vector<32x32xf32> to vector<8x32xf32>
    %cst_33 = arith.constant dense<0.000000e+00> : vector<16x32xf32>
    %87 = tpu.matmul %85, %86, %cst_33 {dimension_numbers = #tpu.dot_dimension_numbers<[1], [0], [0], [1], [0, 0, 1, 1], [], []>} : vector<16x8xf32>, vector<8x32xf32>, vector<16x32xf32> -> vector<16x32xf32>
    %88 = arith.addf %68, %87 : vector<16x32xf32>
    %89 = vector.extract_strided_slice %45 {offsets = [0, 16], sizes = [16, 8], strides = [1, 1]} : vector<16x96xf32> to vector<16x8xf32>
    %90 = vector.extract_strided_slice %45 {offsets = [0, 48], sizes = [16, 8], strides = [1, 1]} : vector<16x96xf32> to vector<16x8xf32>
    %91 = vector.extract_strided_slice %45 {offsets = [0, 80], sizes = [16, 8], strides = [1, 1]} : vector<16x96xf32> to vector<16x8xf32>
    %cst_34 = arith.constant dense<0.000000e+00> : vector<16x16xf32>
    %92 = tpu.matmul %89, %90, %cst_34 {dimension_numbers = #tpu.dot_dimension_numbers<[1], [1], [0], [0], [0, 0, 1, 0], [], []>} : vector<16x8xf32>, vector<16x8xf32>, vector<16x16xf32> -> vector<16x16xf32>
    %cst_35 = arith.constant 0.353553385 : f32
    %93 = vector.broadcast %cst_35 : f32 to vector<16x16xf32>
    %94 = arith.mulf %92, %93 : vector<16x16xf32>
    %95 = arith.addf %94, %37 : vector<16x16xf32>
    %cst_36 = arith.constant dense<0xFF800000> : vector<16xf32>
    %96 = vector.multi_reduction <maximumf>, %95, %cst_36 [1] : vector<16x16xf32> to vector<16xf32>
    %97 = vector.shape_cast %96 : vector<16xf32> to vector<16x1xf32>
    %98 = vector.broadcast %97 : vector<16x1xf32> to vector<16x16xf32>
    %99 = arith.subf %95, %98 : vector<16x16xf32>
    %100 = math.exp %99 : vector<16x16xf32>
    %cst_37 = arith.constant dense<0.000000e+00> : vector<16xf32>
    %101 = vector.multi_reduction <add>, %100, %cst_37 [1] : vector<16x16xf32> to vector<16xf32>
    %102 = vector.shape_cast %101 : vector<16xf32> to vector<16x1xf32>
    %103 = vector.broadcast %102 : vector<16x1xf32> to vector<16x16xf32>
    %104 = arith.divf %100, %103 : vector<16x16xf32>
    %cst_38 = arith.constant dense<0.000000e+00> : vector<16x8xf32>
    %105 = tpu.matmul %104, %91, %cst_38 {dimension_numbers = #tpu.dot_dimension_numbers<[1], [0], [0], [1], [0, 0, 1, 1], [], []>} : vector<16x16xf32>, vector<16x8xf32>, vector<16x8xf32> -> vector<16x8xf32>
    %106 = vector.extract_strided_slice %47 {offsets = [16, 0], sizes = [8, 32], strides = [1, 1]} : vector<32x32xf32> to vector<8x32xf32>
    %cst_39 = arith.constant dense<0.000000e+00> : vector<16x32xf32>
    %107 = tpu.matmul %105, %106, %cst_39 {dimension_numbers = #tpu.dot_dimension_numbers<[1], [0], [0], [1], [0, 0, 1, 1], [], []>} : vector<16x8xf32>, vector<8x32xf32>, vector<16x32xf32> -> vector<16x32xf32>
    %108 = arith.addf %88, %107 : vector<16x32xf32>
    %109 = vector.extract_strided_slice %45 {offsets = [0, 24], sizes = [16, 8], strides = [1, 1]} : vector<16x96xf32> to vector<16x8xf32>
    %110 = vector.extract_strided_slice %45 {offsets = [0, 56], sizes = [16, 8], strides = [1, 1]} : vector<16x96xf32> to vector<16x8xf32>
    %111 = vector.extract_strided_slice %45 {offsets = [0, 88], sizes = [16, 8], strides = [1, 1]} : vector<16x96xf32> to vector<16x8xf32>
    %cst_40 = arith.constant dense<0.000000e+00> : vector<16x16xf32>
    %112 = tpu.matmul %109, %110, %cst_40 {dimension_numbers = #tpu.dot_dimension_numbers<[1], [1], [0], [0], [0, 0, 1, 0], [], []>} : vector<16x8xf32>, vector<16x8xf32>, vector<16x16xf32> -> vector<16x16xf32>
    %cst_41 = arith.constant 0.353553385 : f32
    %113 = vector.broadcast %cst_41 : f32 to vector<16x16xf32>
    %114 = arith.mulf %112, %113 : vector<16x16xf32>
    %115 = arith.addf %114, %37 : vector<16x16xf32>
    %cst_42 = arith.constant dense<0xFF800000> : vector<16xf32>
    %116 = vector.multi_reduction <maximumf>, %115, %cst_42 [1] : vector<16x16xf32> to vector<16xf32>
    %117 = vector.shape_cast %116 : vector<16xf32> to vector<16x1xf32>
    %118 = vector.broadcast %117 : vector<16x1xf32> to vector<16x16xf32>
    %119 = arith.subf %115, %118 : vector<16x16xf32>
    %120 = math.exp %119 : vector<16x16xf32>
    %cst_43 = arith.constant dense<0.000000e+00> : vector<16xf32>
    %121 = vector.multi_reduction <add>, %120, %cst_43 [1] : vector<16x16xf32> to vector<16xf32>
    %122 = vector.shape_cast %121 : vector<16xf32> to vector<16x1xf32>
    %123 = vector.broadcast %122 : vector<16x1xf32> to vector<16x16xf32>
    %124 = arith.divf %120, %123 : vector<16x16xf32>
    %cst_44 = arith.constant dense<0.000000e+00> : vector<16x8xf32>
    %125 = tpu.matmul %124, %111, %cst_44 {dimension_numbers = #tpu.dot_dimension_numbers<[1], [0], [0], [1], [0, 0, 1, 1], [], []>} : vector<16x16xf32>, vector<16x8xf32>, vector<16x8xf32> -> vector<16x8xf32>
    %126 = vector.extract_strided_slice %47 {offsets = [24, 0], sizes = [8, 32], strides = [1, 1]} : vector<32x32xf32> to vector<8x32xf32>
    %cst_45 = arith.constant dense<0.000000e+00> : vector<16x32xf32>
    %127 = tpu.matmul %125, %126, %cst_45 {dimension_numbers = #tpu.dot_dimension_numbers<[1], [0], [0], [1], [0, 0, 1, 1], [], []>} : vector<16x8xf32>, vector<8x32xf32>, vector<16x32xf32> -> vector<16x32xf32>
    %128 = arith.addf %108, %127 : vector<16x32xf32>
    %c0_46 = arith.constant 0 : index
    %c0_47 = arith.constant 0 : index
    %c0_48 = arith.constant 0 : index
    %129 = vector.load %arg4[%c0_46, %c0_47, %c0_48] : memref<2x1x32xf32, #tpu.memory_space<vmem>>, vector<1x1x32xf32>
    %130 = vector.shape_cast %129 : vector<1x1x32xf32> to vector<1x32xf32>
    %131 = vector.broadcast %130 : vector<1x32xf32> to vector<16x32xf32>
    %132 = arith.addf %128, %131 : vector<16x32xf32>
    %c0_49 = arith.constant 0 : index
    %c0_50 = arith.constant 0 : index
    %c0_51 = arith.constant 0 : index
    %133 = vector.load %arg9[%c0_49, %c0_50, %c0_51] : memref<2x2x32xf32, #tpu.memory_space<vmem>>, vector<1x2x32xf32>
    %134 = vector.shape_cast %133 : vector<1x2x32xf32> to vector<2x32xf32>
    %135 = arith.addf %38, %132 : vector<16x32xf32>
    %136 = vector.extract_strided_slice %134 {offsets = [0, 0], sizes = [1, 32], strides = [1, 1]} : vector<2x32xf32> to vector<1x32xf32>
    %137 = vector.extract_strided_slice %134 {offsets = [1, 0], sizes = [1, 32], strides = [1, 1]} : vector<2x32xf32> to vector<1x32xf32>
    %cst_52 = arith.constant dense<0.000000e+00> : vector<16xf32>
    %138 = vector.multi_reduction <add>, %135, %cst_52 [1] : vector<16x32xf32> to vector<16xf32>
    %139 = vector.shape_cast %138 : vector<16xf32> to vector<16x1xf32>
    %cst_53 = arith.constant 3.200000e+01 : f32
    %140 = vector.broadcast %cst_53 : f32 to vector<16x1xf32>
    %141 = arith.divf %139, %140 : vector<16x1xf32>
    %142 = vector.broadcast %141 : vector<16x1xf32> to vector<16x32xf32>
    %143 = arith.subf %135, %142 : vector<16x32xf32>
    %144 = arith.mulf %143, %143 : vector<16x32xf32>
    %cst_54 = arith.constant dense<0.000000e+00> : vector<16xf32>
    %145 = vector.multi_reduction <add>, %144, %cst_54 [1] : vector<16x32xf32> to vector<16xf32>
    %146 = vector.shape_cast %145 : vector<16xf32> to vector<16x1xf32>
    %cst_55 = arith.constant 3.200000e+01 : f32
    %147 = vector.broadcast %cst_55 : f32 to vector<16x1xf32>
    %148 = arith.divf %146, %147 : vector<16x1xf32>
    %149 = vector.broadcast %141 : vector<16x1xf32> to vector<16x32xf32>
    %150 = arith.subf %135, %149 : vector<16x32xf32>
    %cst_56 = arith.constant 9.99999974E-6 : f32
    %151 = vector.broadcast %cst_56 : f32 to vector<16x1xf32>
    %152 = arith.addf %148, %151 : vector<16x1xf32>
    %153 = math.rsqrt %152 : vector<16x1xf32>
    %154 = vector.broadcast %153 : vector<16x1xf32> to vector<16x32xf32>
    %155 = arith.mulf %150, %154 : vector<16x32xf32>
    %156 = vector.broadcast %136 : vector<1x32xf32> to vector<16x32xf32>
    %157 = arith.mulf %155, %156 : vector<16x32xf32>
    %158 = vector.broadcast %137 : vector<1x32xf32> to vector<16x32xf32>
    %159 = arith.addf %157, %158 : vector<16x32xf32>
    %c0_57 = arith.constant 0 : index
    %c0_58 = arith.constant 0 : index
    %c0_59 = arith.constant 0 : index
    %160 = vector.load %arg5[%c0_57, %c0_58, %c0_59] : memref<2x32x64xf32, #tpu.memory_space<vmem>>, vector<1x32x64xf32>
    %161 = vector.shape_cast %160 : vector<1x32x64xf32> to vector<32x64xf32>
    %cst_60 = arith.constant dense<0.000000e+00> : vector<16x64xf32>
    %162 = tpu.matmul %159, %161, %cst_60 {dimension_numbers = #tpu.dot_dimension_numbers<[1], [0], [0], [1], [0, 0, 1, 1], [], []>} : vector<16x32xf32>, vector<32x64xf32>, vector<16x64xf32> -> vector<16x64xf32>
    %c0_61 = arith.constant 0 : index
    %c0_62 = arith.constant 0 : index
    %c0_63 = arith.constant 0 : index
    %163 = vector.load %arg6[%c0_61, %c0_62, %c0_63] : memref<2x1x64xf32, #tpu.memory_space<vmem>>, vector<1x1x64xf32>
    %164 = vector.shape_cast %163 : vector<1x1x64xf32> to vector<1x64xf32>
    %165 = vector.broadcast %164 : vector<1x64xf32> to vector<16x64xf32>
    %166 = arith.addf %162, %165 : vector<16x64xf32>
    %cst_64 = arith.constant 0.000000e+00 : f32
    %167 = vector.broadcast %cst_64 : f32 to vector<16x64xf32>
    %168 = arith.maximumf %166, %167 : vector<16x64xf32>
    %c0_65 = arith.constant 0 : index
    %c0_66 = arith.constant 0 : index
    %c0_67 = arith.constant 0 : index
    %169 = vector.load %arg7[%c0_65, %c0_66, %c0_67] : memref<2x64x32xf32, #tpu.memory_space<vmem>>, vector<1x64x32xf32>
    %170 = vector.shape_cast %169 : vector<1x64x32xf32> to vector<64x32xf32>
    %cst_68 = arith.constant dense<0.000000e+00> : vector<16x32xf32>
    %171 = tpu.matmul %168, %170, %cst_68 {dimension_numbers = #tpu.dot_dimension_numbers<[1], [0], [0], [1], [0, 0, 1, 1], [], []>} : vector<16x64xf32>, vector<64x32xf32>, vector<16x32xf32> -> vector<16x32xf32>
    %c0_69 = arith.constant 0 : index
    %c0_70 = arith.constant 0 : index
    %c0_71 = arith.constant 0 : index
    %172 = vector.load %arg8[%c0_69, %c0_70, %c0_71] : memref<2x1x32xf32, #tpu.memory_space<vmem>>, vector<1x1x32xf32>
    %173 = vector.shape_cast %172 : vector<1x1x32xf32> to vector<1x32xf32>
    %174 = vector.broadcast %173 : vector<1x32xf32> to vector<16x32xf32>
    %175 = arith.addf %171, %174 : vector<16x32xf32>
    %c0_72 = arith.constant 0 : index
    %c0_73 = arith.constant 0 : index
    %c0_74 = arith.constant 0 : index
    %176 = vector.load %arg10[%c0_72, %c0_73, %c0_74] : memref<2x2x32xf32, #tpu.memory_space<vmem>>, vector<1x2x32xf32>
    %177 = vector.shape_cast %176 : vector<1x2x32xf32> to vector<2x32xf32>
    %178 = arith.addf %159, %175 : vector<16x32xf32>
    %179 = vector.extract_strided_slice %177 {offsets = [0, 0], sizes = [1, 32], strides = [1, 1]} : vector<2x32xf32> to vector<1x32xf32>
    %180 = vector.extract_strided_slice %177 {offsets = [1, 0], sizes = [1, 32], strides = [1, 1]} : vector<2x32xf32> to vector<1x32xf32>
    %cst_75 = arith.constant dense<0.000000e+00> : vector<16xf32>
    %181 = vector.multi_reduction <add>, %178, %cst_75 [1] : vector<16x32xf32> to vector<16xf32>
    %182 = vector.shape_cast %181 : vector<16xf32> to vector<16x1xf32>
    %cst_76 = arith.constant 3.200000e+01 : f32
    %183 = vector.broadcast %cst_76 : f32 to vector<16x1xf32>
    %184 = arith.divf %182, %183 : vector<16x1xf32>
    %185 = vector.broadcast %184 : vector<16x1xf32> to vector<16x32xf32>
    %186 = arith.subf %178, %185 : vector<16x32xf32>
    %187 = arith.mulf %186, %186 : vector<16x32xf32>
    %cst_77 = arith.constant dense<0.000000e+00> : vector<16xf32>
    %188 = vector.multi_reduction <add>, %187, %cst_77 [1] : vector<16x32xf32> to vector<16xf32>
    %189 = vector.shape_cast %188 : vector<16xf32> to vector<16x1xf32>
    %cst_78 = arith.constant 3.200000e+01 : f32
    %190 = vector.broadcast %cst_78 : f32 to vector<16x1xf32>
    %191 = arith.divf %189, %190 : vector<16x1xf32>
    %192 = vector.broadcast %184 : vector<16x1xf32> to vector<16x32xf32>
    %193 = arith.subf %178, %192 : vector<16x32xf32>
    %cst_79 = arith.constant 9.99999974E-6 : f32
    %194 = vector.broadcast %cst_79 : f32 to vector<16x1xf32>
    %195 = arith.addf %191, %194 : vector<16x1xf32>
    %196 = math.rsqrt %195 : vector<16x1xf32>
    %197 = vector.broadcast %196 : vector<16x1xf32> to vector<16x32xf32>
    %198 = arith.mulf %193, %197 : vector<16x32xf32>
    %199 = vector.broadcast %179 : vector<1x32xf32> to vector<16x32xf32>
    %200 = arith.mulf %198, %199 : vector<16x32xf32>
    %201 = vector.broadcast %180 : vector<1x32xf32> to vector<16x32xf32>
    %202 = arith.addf %200, %201 : vector<16x32xf32>
    %c1 = arith.constant 1 : index
    %c0_80 = arith.constant 0 : index
    %c0_81 = arith.constant 0 : index
    %203 = vector.load %arg1[%c1, %c0_80, %c0_81] : memref<2x32x96xf32, #tpu.memory_space<vmem>>, vector<1x32x96xf32>
    %204 = vector.shape_cast %203 : vector<1x32x96xf32> to vector<32x96xf32>
    %cst_82 = arith.constant dense<0.000000e+00> : vector<16x96xf32>
    %205 = tpu.matmul %202, %204, %cst_82 {dimension_numbers = #tpu.dot_dimension_numbers<[1], [0], [0], [1], [0, 0, 1, 1], [], []>} : vector<16x32xf32>, vector<32x96xf32>, vector<16x96xf32> -> vector<16x96xf32>
    %c1_83 = arith.constant 1 : index
    %c0_84 = arith.constant 0 : index
    %c0_85 = arith.constant 0 : index
    %206 = vector.load %arg2[%c1_83, %c0_84, %c0_85] : memref<2x1x96xf32, #tpu.memory_space<vmem>>, vector<1x1x96xf32>
    %207 = vector.shape_cast %206 : vector<1x1x96xf32> to vector<1x96xf32>
    %208 = vector.broadcast %207 : vector<1x96xf32> to vector<16x96xf32>
    %209 = arith.addf %205, %208 : vector<16x96xf32>
    %c1_86 = arith.constant 1 : index
    %c0_87 = arith.constant 0 : index
    %c0_88 = arith.constant 0 : index
    %210 = vector.load %arg3[%c1_86, %c0_87, %c0_88] : memref<2x32x32xf32, #tpu.memory_space<vmem>>, vector<1x32x32xf32>
    %211 = vector.shape_cast %210 : vector<1x32x32xf32> to vector<32x32xf32>
    %cst_89 = arith.constant 0.000000e+00 : f32
    %212 = vector.broadcast %cst_89 : f32 to vector<16x32xf32>
    %213 = vector.extract_strided_slice %209 {offsets = [0, 0], sizes = [16, 8], strides = [1, 1]} : vector<16x96xf32> to vector<16x8xf32>
    %214 = vector.extract_strided_slice %209 {offsets = [0, 32], sizes = [16, 8], strides = [1, 1]} : vector<16x96xf32> to vector<16x8xf32>
    %215 = vector.extract_strided_slice %209 {offsets = [0, 64], sizes = [16, 8], strides = [1, 1]} : vector<16x96xf32> to vector<16x8xf32>
    %cst_90 = arith.constant dense<0.000000e+00> : vector<16x16xf32>
    %216 = tpu.matmul %213, %214, %cst_90 {dimension_numbers = #tpu.dot_dimension_numbers<[1], [1], [0], [0], [0, 0, 1, 0], [], []>} : vector<16x8xf32>, vector<16x8xf32>, vector<16x16xf32> -> vector<16x16xf32>
    %cst_91 = arith.constant 0.353553385 : f32
    %217 = vector.broadcast %cst_91 : f32 to vector<16x16xf32>
    %218 = arith.mulf %216, %217 : vector<16x16xf32>
    %219 = arith.addf %218, %37 : vector<16x16xf32>
    %cst_92 = arith.constant dense<0xFF800000> : vector<16xf32>
    %220 = vector.multi_reduction <maximumf>, %219, %cst_92 [1] : vector<16x16xf32> to vector<16xf32>
    %221 = vector.shape_cast %220 : vector<16xf32> to vector<16x1xf32>
    %222 = vector.broadcast %221 : vector<16x1xf32> to vector<16x16xf32>
    %223 = arith.subf %219, %222 : vector<16x16xf32>
    %224 = math.exp %223 : vector<16x16xf32>
    %cst_93 = arith.constant dense<0.000000e+00> : vector<16xf32>
    %225 = vector.multi_reduction <add>, %224, %cst_93 [1] : vector<16x16xf32> to vector<16xf32>
    %226 = vector.shape_cast %225 : vector<16xf32> to vector<16x1xf32>
    %227 = vector.broadcast %226 : vector<16x1xf32> to vector<16x16xf32>
    %228 = arith.divf %224, %227 : vector<16x16xf32>
    %cst_94 = arith.constant dense<0.000000e+00> : vector<16x8xf32>
    %229 = tpu.matmul %228, %215, %cst_94 {dimension_numbers = #tpu.dot_dimension_numbers<[1], [0], [0], [1], [0, 0, 1, 1], [], []>} : vector<16x16xf32>, vector<16x8xf32>, vector<16x8xf32> -> vector<16x8xf32>
    %230 = vector.extract_strided_slice %211 {offsets = [0, 0], sizes = [8, 32], strides = [1, 1]} : vector<32x32xf32> to vector<8x32xf32>
    %cst_95 = arith.constant dense<0.000000e+00> : vector<16x32xf32>
    %231 = tpu.matmul %229, %230, %cst_95 {dimension_numbers = #tpu.dot_dimension_numbers<[1], [0], [0], [1], [0, 0, 1, 1], [], []>} : vector<16x8xf32>, vector<8x32xf32>, vector<16x32xf32> -> vector<16x32xf32>
    %232 = arith.addf %212, %231 : vector<16x32xf32>
    %233 = vector.extract_strided_slice %209 {offsets = [0, 8], sizes = [16, 8], strides = [1, 1]} : vector<16x96xf32> to vector<16x8xf32>
    %234 = vector.extract_strided_slice %209 {offsets = [0, 40], sizes = [16, 8], strides = [1, 1]} : vector<16x96xf32> to vector<16x8xf32>
    %235 = vector.extract_strided_slice %209 {offsets = [0, 72], sizes = [16, 8], strides = [1, 1]} : vector<16x96xf32> to vector<16x8xf32>
    %cst_96 = arith.constant dense<0.000000e+00> : vector<16x16xf32>
    %236 = tpu.matmul %233, %234, %cst_96 {dimension_numbers = #tpu.dot_dimension_numbers<[1], [1], [0], [0], [0, 0, 1, 0], [], []>} : vector<16x8xf32>, vector<16x8xf32>, vector<16x16xf32> -> vector<16x16xf32>
    %cst_97 = arith.constant 0.353553385 : f32
    %237 = vector.broadcast %cst_97 : f32 to vector<16x16xf32>
    %238 = arith.mulf %236, %237 : vector<16x16xf32>
    %239 = arith.addf %238, %37 : vector<16x16xf32>
    %cst_98 = arith.constant dense<0xFF800000> : vector<16xf32>
    %240 = vector.multi_reduction <maximumf>, %239, %cst_98 [1] : vector<16x16xf32> to vector<16xf32>
    %241 = vector.shape_cast %240 : vector<16xf32> to vector<16x1xf32>
    %242 = vector.broadcast %241 : vector<16x1xf32> to vector<16x16xf32>
    %243 = arith.subf %239, %242 : vector<16x16xf32>
    %244 = math.exp %243 : vector<16x16xf32>
    %cst_99 = arith.constant dense<0.000000e+00> : vector<16xf32>
    %245 = vector.multi_reduction <add>, %244, %cst_99 [1] : vector<16x16xf32> to vector<16xf32>
    %246 = vector.shape_cast %245 : vector<16xf32> to vector<16x1xf32>
    %247 = vector.broadcast %246 : vector<16x1xf32> to vector<16x16xf32>
    %248 = arith.divf %244, %247 : vector<16x16xf32>
    %cst_100 = arith.constant dense<0.000000e+00> : vector<16x8xf32>
    %249 = tpu.matmul %248, %235, %cst_100 {dimension_numbers = #tpu.dot_dimension_numbers<[1], [0], [0], [1], [0, 0, 1, 1], [], []>} : vector<16x16xf32>, vector<16x8xf32>, vector<16x8xf32> -> vector<16x8xf32>
    %250 = vector.extract_strided_slice %211 {offsets = [8, 0], sizes = [8, 32], strides = [1, 1]} : vector<32x32xf32> to vector<8x32xf32>
    %cst_101 = arith.constant dense<0.000000e+00> : vector<16x32xf32>
    %251 = tpu.matmul %249, %250, %cst_101 {dimension_numbers = #tpu.dot_dimension_numbers<[1], [0], [0], [1], [0, 0, 1, 1], [], []>} : vector<16x8xf32>, vector<8x32xf32>, vector<16x32xf32> -> vector<16x32xf32>
    %252 = arith.addf %232, %251 : vector<16x32xf32>
    %253 = vector.extract_strided_slice %209 {offsets = [0, 16], sizes = [16, 8], strides = [1, 1]} : vector<16x96xf32> to vector<16x8xf32>
    %254 = vector.extract_strided_slice %209 {offsets = [0, 48], sizes = [16, 8], strides = [1, 1]} : vector<16x96xf32> to vector<16x8xf32>
    %255 = vector.extract_strided_slice %209 {offsets = [0, 80], sizes = [16, 8], strides = [1, 1]} : vector<16x96xf32> to vector<16x8xf32>
    %cst_102 = arith.constant dense<0.000000e+00> : vector<16x16xf32>
    %256 = tpu.matmul %253, %254, %cst_102 {dimension_numbers = #tpu.dot_dimension_numbers<[1], [1], [0], [0], [0, 0, 1, 0], [], []>} : vector<16x8xf32>, vector<16x8xf32>, vector<16x16xf32> -> vector<16x16xf32>
    %cst_103 = arith.constant 0.353553385 : f32
    %257 = vector.broadcast %cst_103 : f32 to vector<16x16xf32>
    %258 = arith.mulf %256, %257 : vector<16x16xf32>
    %259 = arith.addf %258, %37 : vector<16x16xf32>
    %cst_104 = arith.constant dense<0xFF800000> : vector<16xf32>
    %260 = vector.multi_reduction <maximumf>, %259, %cst_104 [1] : vector<16x16xf32> to vector<16xf32>
    %261 = vector.shape_cast %260 : vector<16xf32> to vector<16x1xf32>
    %262 = vector.broadcast %261 : vector<16x1xf32> to vector<16x16xf32>
    %263 = arith.subf %259, %262 : vector<16x16xf32>
    %264 = math.exp %263 : vector<16x16xf32>
    %cst_105 = arith.constant dense<0.000000e+00> : vector<16xf32>
    %265 = vector.multi_reduction <add>, %264, %cst_105 [1] : vector<16x16xf32> to vector<16xf32>
    %266 = vector.shape_cast %265 : vector<16xf32> to vector<16x1xf32>
    %267 = vector.broadcast %266 : vector<16x1xf32> to vector<16x16xf32>
    %268 = arith.divf %264, %267 : vector<16x16xf32>
    %cst_106 = arith.constant dense<0.000000e+00> : vector<16x8xf32>
    %269 = tpu.matmul %268, %255, %cst_106 {dimension_numbers = #tpu.dot_dimension_numbers<[1], [0], [0], [1], [0, 0, 1, 1], [], []>} : vector<16x16xf32>, vector<16x8xf32>, vector<16x8xf32> -> vector<16x8xf32>
    %270 = vector.extract_strided_slice %211 {offsets = [16, 0], sizes = [8, 32], strides = [1, 1]} : vector<32x32xf32> to vector<8x32xf32>
    %cst_107 = arith.constant dense<0.000000e+00> : vector<16x32xf32>
    %271 = tpu.matmul %269, %270, %cst_107 {dimension_numbers = #tpu.dot_dimension_numbers<[1], [0], [0], [1], [0, 0, 1, 1], [], []>} : vector<16x8xf32>, vector<8x32xf32>, vector<16x32xf32> -> vector<16x32xf32>
    %272 = arith.addf %252, %271 : vector<16x32xf32>
    %273 = vector.extract_strided_slice %209 {offsets = [0, 24], sizes = [16, 8], strides = [1, 1]} : vector<16x96xf32> to vector<16x8xf32>
    %274 = vector.extract_strided_slice %209 {offsets = [0, 56], sizes = [16, 8], strides = [1, 1]} : vector<16x96xf32> to vector<16x8xf32>
    %275 = vector.extract_strided_slice %209 {offsets = [0, 88], sizes = [16, 8], strides = [1, 1]} : vector<16x96xf32> to vector<16x8xf32>
    %cst_108 = arith.constant dense<0.000000e+00> : vector<16x16xf32>
    %276 = tpu.matmul %273, %274, %cst_108 {dimension_numbers = #tpu.dot_dimension_numbers<[1], [1], [0], [0], [0, 0, 1, 0], [], []>} : vector<16x8xf32>, vector<16x8xf32>, vector<16x16xf32> -> vector<16x16xf32>
    %cst_109 = arith.constant 0.353553385 : f32
    %277 = vector.broadcast %cst_109 : f32 to vector<16x16xf32>
    %278 = arith.mulf %276, %277 : vector<16x16xf32>
    %279 = arith.addf %278, %37 : vector<16x16xf32>
    %cst_110 = arith.constant dense<0xFF800000> : vector<16xf32>
    %280 = vector.multi_reduction <maximumf>, %279, %cst_110 [1] : vector<16x16xf32> to vector<16xf32>
    %281 = vector.shape_cast %280 : vector<16xf32> to vector<16x1xf32>
    %282 = vector.broadcast %281 : vector<16x1xf32> to vector<16x16xf32>
    %283 = arith.subf %279, %282 : vector<16x16xf32>
    %284 = math.exp %283 : vector<16x16xf32>
    %cst_111 = arith.constant dense<0.000000e+00> : vector<16xf32>
    %285 = vector.multi_reduction <add>, %284, %cst_111 [1] : vector<16x16xf32> to vector<16xf32>
    %286 = vector.shape_cast %285 : vector<16xf32> to vector<16x1xf32>
    %287 = vector.broadcast %286 : vector<16x1xf32> to vector<16x16xf32>
    %288 = arith.divf %284, %287 : vector<16x16xf32>
    %cst_112 = arith.constant dense<0.000000e+00> : vector<16x8xf32>
    %289 = tpu.matmul %288, %275, %cst_112 {dimension_numbers = #tpu.dot_dimension_numbers<[1], [0], [0], [1], [0, 0, 1, 1], [], []>} : vector<16x16xf32>, vector<16x8xf32>, vector<16x8xf32> -> vector<16x8xf32>
    %290 = vector.extract_strided_slice %211 {offsets = [24, 0], sizes = [8, 32], strides = [1, 1]} : vector<32x32xf32> to vector<8x32xf32>
    %cst_113 = arith.constant dense<0.000000e+00> : vector<16x32xf32>
    %291 = tpu.matmul %289, %290, %cst_113 {dimension_numbers = #tpu.dot_dimension_numbers<[1], [0], [0], [1], [0, 0, 1, 1], [], []>} : vector<16x8xf32>, vector<8x32xf32>, vector<16x32xf32> -> vector<16x32xf32>
    %292 = arith.addf %272, %291 : vector<16x32xf32>
    %c1_114 = arith.constant 1 : index
    %c0_115 = arith.constant 0 : index
    %c0_116 = arith.constant 0 : index
    %293 = vector.load %arg4[%c1_114, %c0_115, %c0_116] : memref<2x1x32xf32, #tpu.memory_space<vmem>>, vector<1x1x32xf32>
    %294 = vector.shape_cast %293 : vector<1x1x32xf32> to vector<1x32xf32>
    %295 = vector.broadcast %294 : vector<1x32xf32> to vector<16x32xf32>
    %296 = arith.addf %292, %295 : vector<16x32xf32>
    %c1_117 = arith.constant 1 : index
    %c0_118 = arith.constant 0 : index
    %c0_119 = arith.constant 0 : index
    %297 = vector.load %arg9[%c1_117, %c0_118, %c0_119] : memref<2x2x32xf32, #tpu.memory_space<vmem>>, vector<1x2x32xf32>
    %298 = vector.shape_cast %297 : vector<1x2x32xf32> to vector<2x32xf32>
    %299 = arith.addf %202, %296 : vector<16x32xf32>
    %300 = vector.extract_strided_slice %298 {offsets = [0, 0], sizes = [1, 32], strides = [1, 1]} : vector<2x32xf32> to vector<1x32xf32>
    %301 = vector.extract_strided_slice %298 {offsets = [1, 0], sizes = [1, 32], strides = [1, 1]} : vector<2x32xf32> to vector<1x32xf32>
    %cst_120 = arith.constant dense<0.000000e+00> : vector<16xf32>
    %302 = vector.multi_reduction <add>, %299, %cst_120 [1] : vector<16x32xf32> to vector<16xf32>
    %303 = vector.shape_cast %302 : vector<16xf32> to vector<16x1xf32>
    %cst_121 = arith.constant 3.200000e+01 : f32
    %304 = vector.broadcast %cst_121 : f32 to vector<16x1xf32>
    %305 = arith.divf %303, %304 : vector<16x1xf32>
    %306 = vector.broadcast %305 : vector<16x1xf32> to vector<16x32xf32>
    %307 = arith.subf %299, %306 : vector<16x32xf32>
    %308 = arith.mulf %307, %307 : vector<16x32xf32>
    %cst_122 = arith.constant dense<0.000000e+00> : vector<16xf32>
    %309 = vector.multi_reduction <add>, %308, %cst_122 [1] : vector<16x32xf32> to vector<16xf32>
    %310 = vector.shape_cast %309 : vector<16xf32> to vector<16x1xf32>
    %cst_123 = arith.constant 3.200000e+01 : f32
    %311 = vector.broadcast %cst_123 : f32 to vector<16x1xf32>
    %312 = arith.divf %310, %311 : vector<16x1xf32>
    %313 = vector.broadcast %305 : vector<16x1xf32> to vector<16x32xf32>
    %314 = arith.subf %299, %313 : vector<16x32xf32>
    %cst_124 = arith.constant 9.99999974E-6 : f32
    %315 = vector.broadcast %cst_124 : f32 to vector<16x1xf32>
    %316 = arith.addf %312, %315 : vector<16x1xf32>
    %317 = math.rsqrt %316 : vector<16x1xf32>
    %318 = vector.broadcast %317 : vector<16x1xf32> to vector<16x32xf32>
    %319 = arith.mulf %314, %318 : vector<16x32xf32>
    %320 = vector.broadcast %300 : vector<1x32xf32> to vector<16x32xf32>
    %321 = arith.mulf %319, %320 : vector<16x32xf32>
    %322 = vector.broadcast %301 : vector<1x32xf32> to vector<16x32xf32>
    %323 = arith.addf %321, %322 : vector<16x32xf32>
    %c1_125 = arith.constant 1 : index
    %c0_126 = arith.constant 0 : index
    %c0_127 = arith.constant 0 : index
    %324 = vector.load %arg5[%c1_125, %c0_126, %c0_127] : memref<2x32x64xf32, #tpu.memory_space<vmem>>, vector<1x32x64xf32>
    %325 = vector.shape_cast %324 : vector<1x32x64xf32> to vector<32x64xf32>
    %cst_128 = arith.constant dense<0.000000e+00> : vector<16x64xf32>
    %326 = tpu.matmul %323, %325, %cst_128 {dimension_numbers = #tpu.dot_dimension_numbers<[1], [0], [0], [1], [0, 0, 1, 1], [], []>} : vector<16x32xf32>, vector<32x64xf32>, vector<16x64xf32> -> vector<16x64xf32>
    %c1_129 = arith.constant 1 : index
    %c0_130 = arith.constant 0 : index
    %c0_131 = arith.constant 0 : index
    %327 = vector.load %arg6[%c1_129, %c0_130, %c0_131] : memref<2x1x64xf32, #tpu.memory_space<vmem>>, vector<1x1x64xf32>
    %328 = vector.shape_cast %327 : vector<1x1x64xf32> to vector<1x64xf32>
    %329 = vector.broadcast %328 : vector<1x64xf32> to vector<16x64xf32>
    %330 = arith.addf %326, %329 : vector<16x64xf32>
    %cst_132 = arith.constant 0.000000e+00 : f32
    %331 = vector.broadcast %cst_132 : f32 to vector<16x64xf32>
    %332 = arith.maximumf %330, %331 : vector<16x64xf32>
    %c1_133 = arith.constant 1 : index
    %c0_134 = arith.constant 0 : index
    %c0_135 = arith.constant 0 : index
    %333 = vector.load %arg7[%c1_133, %c0_134, %c0_135] : memref<2x64x32xf32, #tpu.memory_space<vmem>>, vector<1x64x32xf32>
    %334 = vector.shape_cast %333 : vector<1x64x32xf32> to vector<64x32xf32>
    %cst_136 = arith.constant dense<0.000000e+00> : vector<16x32xf32>
    %335 = tpu.matmul %332, %334, %cst_136 {dimension_numbers = #tpu.dot_dimension_numbers<[1], [0], [0], [1], [0, 0, 1, 1], [], []>} : vector<16x64xf32>, vector<64x32xf32>, vector<16x32xf32> -> vector<16x32xf32>
    %c1_137 = arith.constant 1 : index
    %c0_138 = arith.constant 0 : index
    %c0_139 = arith.constant 0 : index
    %336 = vector.load %arg8[%c1_137, %c0_138, %c0_139] : memref<2x1x32xf32, #tpu.memory_space<vmem>>, vector<1x1x32xf32>
    %337 = vector.shape_cast %336 : vector<1x1x32xf32> to vector<1x32xf32>
    %338 = vector.broadcast %337 : vector<1x32xf32> to vector<16x32xf32>
    %339 = arith.addf %335, %338 : vector<16x32xf32>
    %c1_140 = arith.constant 1 : index
    %c0_141 = arith.constant 0 : index
    %c0_142 = arith.constant 0 : index
    %340 = vector.load %arg10[%c1_140, %c0_141, %c0_142] : memref<2x2x32xf32, #tpu.memory_space<vmem>>, vector<1x2x32xf32>
    %341 = vector.shape_cast %340 : vector<1x2x32xf32> to vector<2x32xf32>
    %342 = arith.addf %323, %339 : vector<16x32xf32>
    %343 = vector.extract_strided_slice %341 {offsets = [0, 0], sizes = [1, 32], strides = [1, 1]} : vector<2x32xf32> to vector<1x32xf32>
    %344 = vector.extract_strided_slice %341 {offsets = [1, 0], sizes = [1, 32], strides = [1, 1]} : vector<2x32xf32> to vector<1x32xf32>
    %cst_143 = arith.constant dense<0.000000e+00> : vector<16xf32>
    %345 = vector.multi_reduction <add>, %342, %cst_143 [1] : vector<16x32xf32> to vector<16xf32>
    %346 = vector.shape_cast %345 : vector<16xf32> to vector<16x1xf32>
    %cst_144 = arith.constant 3.200000e+01 : f32
    %347 = vector.broadcast %cst_144 : f32 to vector<16x1xf32>
    %348 = arith.divf %346, %347 : vector<16x1xf32>
    %349 = vector.broadcast %348 : vector<16x1xf32> to vector<16x32xf32>
    %350 = arith.subf %342, %349 : vector<16x32xf32>
    %351 = arith.mulf %350, %350 : vector<16x32xf32>
    %cst_145 = arith.constant dense<0.000000e+00> : vector<16xf32>
    %352 = vector.multi_reduction <add>, %351, %cst_145 [1] : vector<16x32xf32> to vector<16xf32>
    %353 = vector.shape_cast %352 : vector<16xf32> to vector<16x1xf32>
    %cst_146 = arith.constant 3.200000e+01 : f32
    %354 = vector.broadcast %cst_146 : f32 to vector<16x1xf32>
    %355 = arith.divf %353, %354 : vector<16x1xf32>
    %356 = vector.broadcast %348 : vector<16x1xf32> to vector<16x32xf32>
    %357 = arith.subf %342, %356 : vector<16x32xf32>
    %cst_147 = arith.constant 9.99999974E-6 : f32
    %358 = vector.broadcast %cst_147 : f32 to vector<16x1xf32>
    %359 = arith.addf %355, %358 : vector<16x1xf32>
    %360 = math.rsqrt %359 : vector<16x1xf32>
    %361 = vector.broadcast %360 : vector<16x1xf32> to vector<16x32xf32>
    %362 = arith.mulf %357, %361 : vector<16x32xf32>
    %363 = vector.broadcast %343 : vector<1x32xf32> to vector<16x32xf32>
    %364 = arith.mulf %362, %363 : vector<16x32xf32>
    %365 = vector.broadcast %344 : vector<1x32xf32> to vector<16x32xf32>
    %366 = arith.addf %364, %365 : vector<16x32xf32>
    %c0_148 = arith.constant 0 : index
    %c0_149 = arith.constant 0 : index
    %367 = vector.load %arg11[%c0_148, %c0_149] : memref<2x32xf32, #tpu.memory_space<vmem>>, vector<2x32xf32>
    %368 = vector.extract_strided_slice %367 {offsets = [0, 0], sizes = [1, 32], strides = [1, 1]} : vector<2x32xf32> to vector<1x32xf32>
    %369 = vector.extract_strided_slice %367 {offsets = [1, 0], sizes = [1, 32], strides = [1, 1]} : vector<2x32xf32> to vector<1x32xf32>
    %cst_150 = arith.constant dense<0.000000e+00> : vector<16xf32>
    %370 = vector.multi_reduction <add>, %366, %cst_150 [1] : vector<16x32xf32> to vector<16xf32>
    %371 = vector.shape_cast %370 : vector<16xf32> to vector<16x1xf32>
    %cst_151 = arith.constant 3.200000e+01 : f32
    %372 = vector.broadcast %cst_151 : f32 to vector<16x1xf32>
    %373 = arith.divf %371, %372 : vector<16x1xf32>
    %374 = vector.broadcast %373 : vector<16x1xf32> to vector<16x32xf32>
    %375 = arith.subf %366, %374 : vector<16x32xf32>
    %376 = arith.mulf %375, %375 : vector<16x32xf32>
    %cst_152 = arith.constant dense<0.000000e+00> : vector<16xf32>
    %377 = vector.multi_reduction <add>, %376, %cst_152 [1] : vector<16x32xf32> to vector<16xf32>
    %378 = vector.shape_cast %377 : vector<16xf32> to vector<16x1xf32>
    %cst_153 = arith.constant 3.200000e+01 : f32
    %379 = vector.broadcast %cst_153 : f32 to vector<16x1xf32>
    %380 = arith.divf %378, %379 : vector<16x1xf32>
    %381 = vector.broadcast %373 : vector<16x1xf32> to vector<16x32xf32>
    %382 = arith.subf %366, %381 : vector<16x32xf32>
    %cst_154 = arith.constant 9.99999974E-6 : f32
    %383 = vector.broadcast %cst_154 : f32 to vector<16x1xf32>
    %384 = arith.addf %380, %383 : vector<16x1xf32>
    %385 = math.rsqrt %384 : vector<16x1xf32>
    %386 = vector.broadcast %385 : vector<16x1xf32> to vector<16x32xf32>
    %387 = arith.mulf %382, %386 : vector<16x32xf32>
    %388 = vector.broadcast %368 : vector<1x32xf32> to vector<16x32xf32>
    %389 = arith.mulf %387, %388 : vector<16x32xf32>
    %390 = vector.broadcast %369 : vector<1x32xf32> to vector<16x32xf32>
    %391 = arith.addf %389, %390 : vector<16x32xf32>
    %c0_155 = arith.constant 0 : index
    %c0_156 = arith.constant 0 : index
    %392 = vector.load %arg12[%c0_155, %c0_156] : memref<16x32xf32, #tpu.memory_space<vmem>>, vector<16x32xf32>
    tpu.vector_store %arg12[%c0_155, %c0_156], %391 {strides = array<i32>} : memref<16x32xf32, #tpu.memory_space<vmem>>, vector<16x32xf32>,
    return
  }
}

</mosaic_0001>

<llo_original>
// kernel: transformer_encoder_forward.1
$region0: #{transformer_encoder_forward.1}
  #allocation0 [shape = 'u32[]', space=smem, size = 0x4, offset = 0x4, fixed_abs, tag = 'smem constant byte address 0x4 - core index']
  #allocation1 [shape = 'u32[72,128]{1,0:T(1,128)}', space=vmem, size = 0x9000, scoped, tag = 'internal scratch']
  %s0 = inlined_call_operand.hbm [shape: f32[16,32], index: 0, kind: input, shape index: {}]
  %s1 = inlined_call_operand.vmem [shape: f32[2,32,96], index: 1, kind: input, shape index: {}]
  %s2 = inlined_call_operand.hbm [shape: f32[2,1,96], index: 2, kind: input, shape index: {}]
  %s3 = inlined_call_operand.vmem [shape: f32[2,32,32], index: 3, kind: input, shape index: {}]
  %s4 = inlined_call_operand.hbm [shape: f32[2,1,32], index: 4, kind: input, shape index: {}]
  %s5 = inlined_call_operand.vmem [shape: f32[2,32,64], index: 5, kind: input, shape index: {}]
  %s6 = inlined_call_operand.hbm [shape: f32[2,1,64], index: 6, kind: input, shape index: {}]
  %s7 = inlined_call_operand.vmem [shape: f32[2,64,32], index: 7, kind: input, shape index: {}]
  %s8 = inlined_call_operand.hbm [shape: f32[2,1,32], index: 8, kind: input, shape index: {}]
  %s9 = inlined_call_operand.hbm [shape: f32[2,2,32], index: 9, kind: input, shape index: {}]
  %s10 = inlined_call_operand.vmem [shape: f32[2,2,32], index: 10, kind: input, shape index: {}]
  %s11 = inlined_call_operand.hbm [shape: f32[2,32], index: 11, kind: input, shape index: {}]
  %s12 = inlined_call_operand.hbm [shape: f32[16,32], index: 12, kind: output, shape index: {}]
  %s13 = sld [smem:[#allocation0]]
  $region86: #{transformer_encoder_forward.1} parent=0
    _
  %s15 = ssub.s32 1, %s13
  %s16 = scalar_select 0, %s15, %s13
  $region1: #{transformer_encoder_forward.1} parent=0
    #allocation2 [shape = 'u8[8192]{0}', space=vmem, size = 0x2000, scoped, tag = 'input window, operand 0, single buffered']
    #allocation3 [shape = 's32[1]{0}', space=sflag, size = 0x4, scoped, tag = 'scoped memory for transformer_encoder_forward.1']
    #allocation4 [shape = 's32[1]{0}', space=sflag, size = 0x4, scoped, tag = 'scoped memory for transformer_encoder_forward.1']
    #allocation5 [shape = 'u8[1024]{0}', space=vmem, size = 0x400, scoped, tag = 'input window, operand 2, single buffered']
    #allocation6 [shape = 's32[1]{0}', space=sflag, size = 0x4, scoped, tag = 'scoped memory for transformer_encoder_forward.1']
    #allocation7 [shape = 'u8[1024]{0}', space=vmem, size = 0x400, scoped, tag = 'input window, operand 4, single buffered']
    #allocation8 [shape = 'u8[1024]{0}', space=vmem, size = 0x400, scoped, tag = 'input window, operand 6, single buffered']
    #allocation9 [shape = 's32[1]{0}', space=sflag, size = 0x4, scoped, tag = 'scoped memory for transformer_encoder_forward.1']
    #allocation10 [shape = 'u8[1024]{0}', space=vmem, size = 0x400, scoped, tag = 'input window, operand 8, single buffered']
    #allocation11 [shape = 'u8[2048]{0}', space=vmem, size = 0x800, scoped, tag = 'input window, operand 9, single buffered']
    #allocation12 [shape = 's32[1]{0}', space=sflag, size = 0x4, scoped, tag = 'scoped memory for transformer_encoder_forward.1']
    #allocation13 [shape = 'u8[1024]{0}', space=vmem, size = 0x400, scoped, tag = 'input window, operand 11, single buffered']
    #allocation14 [shape = 'u8[8192]{0}', space=vmem, size = 0x2000, scoped, tag = 'output window, operand 0, single buffered']
    %17 = vsyncpa [#allocation3], 0
    %18 = vsyncpa [#allocation6], 0
    %19 = vsyncpa [#allocation9], 0
    %20 = vsyncpa [#allocation12], 0
    %21 = vsyncpa [#allocation4], 0
    // Predicated region
    $region2: #{transformer_encoder_forward.1} parent=1 // pred_check
      _
    $region3: #{transformer_encoder_forward.1} parent=1 // pred_check_branch
      %23 = sbr.rel (0) target = $region5
    $region4: #{transformer_encoder_forward.1} parent=1 // pred_region
      %25 = vsyncadd [#allocation3], 0
      %s26 = sshll.u32 %s0, 4
      %s27 = int_to_ptr.hbm [resolvable:$true] %s26
      %s28 = sshll.u32 [#allocation2], 4
      %s29 = int_to_ptr.vmem [resolvable:$true] %s28
      %34 = dma.hbm_to_vmem [thread:$0]  %s27, 256, %s29, [#allocation3], 128, 128, 8
    $region5: #{transformer_encoder_forward.1} parent=1 // pred_fallthru
      _
    // Predicated region
    $region6: #{transformer_encoder_forward.1} parent=1 // pred_check
      _
    $region7: #{transformer_encoder_forward.1} parent=1 // pred_check_branch
      %36 = sbr.rel (0) target = $region9
    $region8: #{transformer_encoder_forward.1} parent=1 // pred_region
      _
    $region9: #{transformer_encoder_forward.1} parent=1 // pred_fallthru
      _
    // Predicated region
    $region10: #{transformer_encoder_forward.1} parent=1 // pred_check
      _
    $region11: #{transformer_encoder_forward.1} parent=1 // pred_check_branch
      %38 = sbr.rel (0) target = $region13
    $region12: #{transformer_encoder_forward.1} parent=1 // pred_region
      %40 = vsyncadd [#allocation6], 0
      %s41 = sshll.u32 %s2, 4
      %s42 = int_to_ptr.hbm [resolvable:$true] %s41
      %s43 = sshll.u32 [#allocation5], 4
      %s44 = int_to_ptr.vmem [resolvable:$true] %s43
      %49 = dma.hbm_to_vmem [thread:$0]  %s42, 32, %s44, [#allocation6], 16, 16, 1
    $region13: #{transformer_encoder_forward.1} parent=1 // pred_fallthru
      _
    // Predicated region
    $region14: #{transformer_encoder_forward.1} parent=1 // pred_check
      _
    $region15: #{transformer_encoder_forward.1} parent=1 // pred_check_branch
      %51 = sbr.rel (0) target = $region17
    $region16: #{transformer_encoder_forward.1} parent=1 // pred_region
      _
    $region17: #{transformer_encoder_forward.1} parent=1 // pred_fallthru
      _
    // Predicated region
    $region18: #{transformer_encoder_forward.1} parent=1 // pred_check
      _
    $region19: #{transformer_encoder_forward.1} parent=1 // pred_check_branch
      %53 = sbr.rel (0) target = $region21
    $region20: #{transformer_encoder_forward.1} parent=1 // pred_region
      %55 = vsyncadd [#allocation6], 0
      %s56 = sshll.u32 %s4, 4
      %s57 = int_to_ptr.hbm [resolvable:$true] %s56
      %s58 = sshll.u32 [#allocation7], 4
      %s59 = int_to_ptr.vmem [resolvable:$true] %s58
      %64 = dma.hbm_to_vmem [thread:$0]  %s57, 32, %s59, [#allocation6], 16, 16, 1
    $region21: #{transformer_encoder_forward.1} parent=1 // pred_fallthru
      _
    // Predicated region
    $region22: #{transformer_encoder_forward.1} parent=1 // pred_check
      _
    $region23: #{transformer_encoder_forward.1} parent=1 // pred_check_branch
      %66 = sbr.rel (0) target = $region25
    $region24: #{transformer_encoder_forward.1} parent=1 // pred_region
      _
    $region25: #{transformer_encoder_forward.1} parent=1 // pred_fallthru
      _
    // Predicated region
    $region26: #{transformer_encoder_forward.1} parent=1 // pred_check
      _
    $region27: #{transformer_encoder_forward.1} parent=1 // pred_check_branch
      %68 = sbr.rel (0) target = $region29
    $region28: #{transformer_encoder_forward.1} parent=1 // pred_region
      %70 = vsyncadd [#allocation9], 0
      %s71 = sshll.u32 %s6, 4
      %s72 = int_to_ptr.hbm [resolvable:$true] %s71
      %s73 = sshll.u32 [#allocation8], 4
      %s74 = int_to_ptr.vmem [resolvable:$true] %s73
      %79 = dma.hbm_to_vmem [thread:$0]  %s72, 32, %s74, [#allocation9], 16, 16, 1
    $region29: #{transformer_encoder_forward.1} parent=1 // pred_fallthru
      _
    // Predicated region
    $region30: #{transformer_encoder_forward.1} parent=1 // pred_check
      _
    $region31: #{transformer_encoder_forward.1} parent=1 // pred_check_branch
      %81 = sbr.rel (0) target = $region33
    $region32: #{transformer_encoder_forward.1} parent=1 // pred_region
      _
    $region33: #{transformer_encoder_forward.1} parent=1 // pred_fallthru
      _
    // Predicated region
    $region34: #{transformer_encoder_forward.1} parent=1 // pred_check
      _
    $region35: #{transformer_encoder_forward.1} parent=1 // pred_check_branch
      %83 = sbr.rel (0) target = $region37
    $region36: #{transformer_encoder_forward.1} parent=1 // pred_region
      %85 = vsyncadd [#allocation9], 0
      %s86 = sshll.u32 %s8, 4
      %s87 = int_to_ptr.hbm [resolvable:$true] %s86
      %s88 = sshll.u32 [#allocation10], 4
      %s89 = int_to_ptr.vmem [resolvable:$true] %s88
      %94 = dma.hbm_to_vmem [thread:$0]  %s87, 32, %s89, [#allocation9], 16, 16, 1
    $region37: #{transformer_encoder_forward.1} parent=1 // pred_fallthru
      _
    // Predicated region
    $region38: #{transformer_encoder_forward.1} parent=1 // pred_check
      _
    $region39: #{transformer_encoder_forward.1} parent=1 // pred_check_branch
      %96 = sbr.rel (0) target = $region41
    $region40: #{transformer_encoder_forward.1} parent=1 // pred_region
      %98 = vsyncadd [#allocation12], 0
      %s99 = sshll.u32 %s9, 4
      %s100 = int_to_ptr.hbm [resolvable:$true] %s99
      %s101 = sshll.u32 [#allocation11], 4
      %s102 = int_to_ptr.vmem [resolvable:$true] %s101
      %107 = dma.hbm_to_vmem [thread:$0]  %s100, 64, %s102, [#allocation12], 32, 32, 2
    $region41: #{transformer_encoder_forward.1} parent=1 // pred_fallthru
      _
    // Predicated region
    $region42: #{transformer_encoder_forward.1} parent=1 // pred_check
      _
    $region43: #{transformer_encoder_forward.1} parent=1 // pred_check_branch
      %109 = sbr.rel (0) target = $region45
    $region44: #{transformer_encoder_forward.1} parent=1 // pred_region
      _
    $region45: #{transformer_encoder_forward.1} parent=1 // pred_fallthru
      _
    // Predicated region
    $region46: #{transformer_encoder_forward.1} parent=1 // pred_check
      _
    $region47: #{transformer_encoder_forward.1} parent=1 // pred_check_branch
      %111 = sbr.rel (0) target = $region49
    $region48: #{transformer_encoder_forward.1} parent=1 // pred_region
      %113 = vsyncadd [#allocation12], 0
      %s115 = sshll.u32 %s11, 4
      %s116 = int_to_ptr.hbm [resolvable:$true] %s115
      %s117 = sshll.u32 [#allocation13], 4
      %s118 = int_to_ptr.vmem [resolvable:$true] %s117
      %120 = dma.hbm_to_vmem [thread:$0]  %s116, 32, %s118, [#allocation12]
    $region49: #{transformer_encoder_forward.1} parent=1 // pred_fallthru
      _
    // Predicated region
    $region50: #{transformer_encoder_forward.1} parent=1 // pred_check
      _
    $region51: #{transformer_encoder_forward.1} parent=1 // pred_check_branch
      %122 = sbr.rel (0) target = $region53
    $region52: #{transformer_encoder_forward.1} parent=1 // pred_region
      %124 = dma.done [#allocation3], 256
    $region53: #{transformer_encoder_forward.1} parent=1 // pred_fallthru
      _
    // Predicated region
    $region54: #{transformer_encoder_forward.1} parent=1 // pred_check
      _
    $region55: #{transformer_encoder_forward.1} parent=1 // pred_check_branch
      %126 = sbr.rel (0) target = $region57
    $region56: #{transformer_encoder_forward.1} parent=1 // pred_region
      %128 = dma.done [#allocation6], 32
    $region57: #{transformer_encoder_forward.1} parent=1 // pred_fallthru
      _
    // Predicated region
    $region58: #{transformer_encoder_forward.1} parent=1 // pred_check
      _
    $region59: #{transformer_encoder_forward.1} parent=1 // pred_check_branch
      %130 = sbr.rel (0) target = $region61
    $region60: #{transformer_encoder_forward.1} parent=1 // pred_region
      %132 = dma.done [#allocation6], 32
    $region61: #{transformer_encoder_forward.1} parent=1 // pred_fallthru
      _
    // Predicated region
    $region62: #{transformer_encoder_forward.1} parent=1 // pred_check
      _
    $region63: #{transformer_encoder_forward.1} parent=1 // pred_check_branch
      %134 = sbr.rel (0) target = $region65
    $region64: #{transformer_encoder_forward.1} parent=1 // pred_region
      %136 = dma.done [#allocation9], 32
    $region65: #{transformer_encoder_forward.1} parent=1 // pred_fallthru
      _
    // Predicated region
    $region66: #{transformer_encoder_forward.1} parent=1 // pred_check
      _
    $region67: #{transformer_encoder_forward.1} parent=1 // pred_check_branch
      %138 = sbr.rel (0) target = $region69
    $region68: #{transformer_encoder_forward.1} parent=1 // pred_region
      %140 = dma.done [#allocation9], 32
    $region69: #{transformer_encoder_forward.1} parent=1 // pred_fallthru
      _
    // Predicated region
    $region70: #{transformer_encoder_forward.1} parent=1 // pred_check
      _
    $region71: #{transformer_encoder_forward.1} parent=1 // pred_check_branch
      %142 = sbr.rel (0) target = $region73
    $region72: #{transformer_encoder_forward.1} parent=1 // pred_region
      %144 = dma.done [#allocation12], 64
    $region73: #{transformer_encoder_forward.1} parent=1 // pred_fallthru
      _
    // Predicated region
    $region74: #{transformer_encoder_forward.1} parent=1 // pred_check
      _
    $region75: #{transformer_encoder_forward.1} parent=1 // pred_check_branch
      %146 = sbr.rel (0) target = $region77
    $region76: #{transformer_encoder_forward.1} parent=1 // pred_region
      %148 = dma.done [#allocation12], 32
    $region77: #{transformer_encoder_forward.1} parent=1 // pred_fallthru
      _
    %v149 = vlaneseq
    %v150 = vshrl.u32 %v149, 7
    %v151 = vadd.s32 %v150, 8
    %vm152 = vcmp.lt.s32.totalorder %v150, 0
    %v153 = vsub.s32 0, %v150
    %v154 = vsel %vm152, %v153, %v150
    %v155 = vshrl.u32 %v154, 1
    %v156 = vand.u32 %v154, 1
    %v157 = vsub.s32 0, %v156
    %v158 = vsel %vm152, %v157, %v156
    %vm159 = vcmp.lt.s32.totalorder %v151, 0
    %v160 = vsub.s32 0, %v151
    %v161 = vsel %vm159, %v160, %v151
    %v162 = vshrl.u32 %v161, 1
    %v163 = vand.u32 %v161, 1
    %v164 = vsub.s32 0, %v163
    %v165 = vsel %vm159, %v164, %v163
    %vm166 = vcmp.ne.s32.totalorder %v158, 0
    %vm167 = vcmp.ne.s32.totalorder %v165, 0
    %vm168 = vcmp.lt.s32.totalorder %v158, 0
    %vm169 = vcmp.lt.s32.totalorder %v165, 0
    %vm170 = vmand %vm168, %vm166
    %vm171 = vmand %vm169, %vm167
    %v172 = vadd.s32 %v158, 2
    %v173 = vadd.s32 %v165, 2
    %v174 = vsel %vm170, %v172, %v158
    %v175 = vsel %vm171, %v173, %v165
    %v176 = vlaneseq
    %v177 = vand.u32 %v176, 127
    %vm178 = vcmp.lt.s32.totalorder %v177, 0
    %v179 = vsub.s32 0, %v177
    %v180 = vsel %vm178, %v179, %v177
    %v181 = vshrl.u32 %v180, 1
    %v182 = vand.u32 %v180, 1
    %v183 = vsub.s32 0, %v182
    %v184 = vsel %vm178, %v183, %v182
    %vm185 = vcmp.ne.s32.totalorder %v184, 0
    %vm186 = vcmp.lt.s32.totalorder %v184, 0
    %vm187 = vmand %vm186, %vm185
    %v188 = vadd.s32 %v184, 2
    %v189 = vsel %vm187, %v188, %v184
    %vm190 = vcmp.eq.s32.totalorder %v174, %v189
    %vm191 = vcmp.eq.s32.totalorder %v175, %v189
    %v192 = vsel %vm190, 0.0, -1e+30
    %v193 = vsel %vm191, 0.0, -1e+30
    %v194 = vld [vmem:[#allocation2] sm:$0xff]
    %v195 = vld [vmem:[#allocation2 + $0x8] sm:$0xff]
    %v196 = vld [vmem:[%s1] sm:$0xff]
    %v197 = vld [vmem:[%s1 + $0x8] sm:$0xff]
    %v198 = vld [vmem:[%s1 + $0x10] sm:$0xff]
    %v199 = vld [vmem:[%s1 + $0x18] sm:$0xff]
    %v200 = vld [vmem:[#allocation5] sm:$0x1]
    %v202 = vperm.slane %v200, 0
    %vm204 = vcmask 261120
    %v206 = vsel %vm204, %v194, 0
    %v209 = vsel %vm204, %v195, 0
    %211 = vmatpush.msra.mxu0 0.0
    %212 = vmatpush.msra.mxu0 0.0
    %213 = vmatpush.msra.mxu0 0.0
    %214 = vmatpush.msra.mxu0 0.0
    %215 = vmatpush.msra.mxu0 0.0
    %216 = vmatpush.msra.mxu0 0.0
    %217 = vmatpush.msra.mxu0 0.0
    %218 = vmatpush.msra.mxu0 0.0
    %219 = vmatpush.msra.mxu0 0.0
    %220 = vmatpush.msra.mxu0 0.0
    %221 = vmatpush.msra.mxu0 0.0
    %222 = vmatpush.msra.mxu0 0.0
    %223 = vmatpush.msra.mxu0 %v199
    %224 = vmatpush.msra.mxu0 %v198
    %225 = vmatpush.msra.mxu0 %v197
    %226 = vmatpush.msra.mxu0 %v196
    %227 = vmatmul.f32.gmra.mxu0 %v206
    %v228 = vpop.f32.mrf.mxu0
    %v229 = vadd.f32 %v202, %v228
    %230 = vmatmul.f32.gmra.mxu0 %v209
    %v231 = vpop.f32.mrf.mxu0
    %v232 = vadd.f32 %v202, %v231
    %233 = vdwg.mxu0
    %v234 = vld [vmem:[%s3] sm:$0xff]
    %v235 = vld [vmem:[%s3 + $0x8] sm:$0xff]
    %v236 = vld [vmem:[%s3 + $0x10] sm:$0xff]
    %v237 = vld [vmem:[%s3 + $0x18] sm:$0xff]
    %240 = vrot.lane.b32.xlu0 %v229, 96
    %v241 = vpop.permute.xlu0 %240
    %242 = vrot.lane.b32.xlu0 %v232, 96
    %v243 = vpop.permute.xlu0 %242
    %vm244 = vcmask 64512
    %v245 = vsel %vm244, %v229, 0
    %v247 = vsel %vm244, %v232, 0
    %v249 = vsel %vm244, %v241, 0
    %v251 = vsel %vm244, %v243, 0
    %253 = vmatpush.xpose.msra.mxu0 0.0
    %254 = vmatpush.xpose.msra.mxu0 0.0
    %255 = vmatpush.xpose.msra.mxu0 0.0
    %256 = vmatpush.xpose.msra.mxu0 0.0
    %257 = vmatpush.xpose.msra.mxu0 0.0
    %258 = vmatpush.xpose.msra.mxu0 0.0
    %259 = vmatpush.xpose.msra.mxu0 0.0
    %260 = vmatpush.xpose.msra.mxu0 0.0
    %261 = vmatpush.xpose.msra.mxu0 0.0
    %262 = vmatpush.xpose.msra.mxu0 0.0
    %263 = vmatpush.xpose.msra.mxu0 0.0
    %264 = vmatpush.xpose.msra.mxu0 0.0
    %265 = vmatpush.xpose.msra.mxu0 0.0
    %266 = vmatpush.xpose.msra.mxu0 0.0
    %267 = vmatpush.xpose.msra.mxu0 %v251
    %268 = vmatpush.xpose.msra.mxu0 %v249
    %269 = vmatmul.f32.gmra.mxu0 %v245
    %v270 = vpop.f32.mrf.mxu0
    %v271 = vadd.f32 0.0, %v270
    %272 = vmatmul.f32.gmra.mxu0 %v247
    %v273 = vpop.f32.mrf.mxu0
    %v274 = vadd.f32 0.0, %v273
    %275 = vdwg.mxu0
    %v276 = vmul.f32 %v271, 0.35355338
    %v277 = vmul.f32 %v274, 0.35355338
    %v278 = vadd.f32 %v276, %v192
    %v279 = vadd.f32 %v277, %v193
    %vm280 = vcmask 130048
    %v281 = vsel %vm280, %v278, -inf
    %282 = vmax.xlane.f32.xlu0 %v281
    %v283 = vpop.xlane.xlu0 %282
    %v284 = vsel %vm280, %v279, -inf
    %285 = vmax.xlane.f32.xlu0 %v284
    %v286 = vpop.xlane.xlu0 %285
    %v287 = vsub.f32 %v278, %v283
    %v288 = vsub.f32 %v279, %v286
    %v289 = vmul.f32 %v287, 1.442695
    %v290 = vpow.pop %v289
    %v291 = vmul.f32 %v288, 1.442695
    %v292 = vpow.pop %v291
    %v293 = vsel %vm280, %v290, 0.0
    %294 = vadd.xlane.f32.xlu0 %v293
    %v295 = vpop.xlane.xlu0 %294
    %v296 = vsel %vm280, %v292, 0.0
    %297 = vadd.xlane.f32.xlu0 %v296
    %v298 = vpop.xlane.xlu0 %297
    %v299 = vrcp.pop %v295
    %v300 = vmul.f32 %v295, %v299
    %v301 = vsub.f32 1.0, %v300
    %v302 = vmul.f32 %v299, %v301
    %v303 = vadd.f32 %v299, %v302
    %vm304 = vweird.f32 %v295
    %vm305 = vweird.f32 %v299
    %vm306 = vmor %vm304, %vm305
    %v307 = vsel %vm306, %v299, %v303
    %v308 = vand.u32 2147483647, %v295
    %vm309 = vcmp.eq.f32.partialorder %v308, 8.507059e+37
    %v310 = vand.u32 %v295, 2147483648
    %v311 = vor.u32 1.1754944e-38, %v310
    %v312 = vsel %vm309, %v311, %v307
    %v313 = vmul.f32 %v290, %v312
    %v314 = vrcp.pop %v298
    %v315 = vmul.f32 %v298, %v314
    %v316 = vsub.f32 1.0, %v315
    %v317 = vmul.f32 %v314, %v316
    %v318 = vadd.f32 %v314, %v317
    %vm319 = vweird.f32 %v298
    %vm320 = vweird.f32 %v314
    %vm321 = vmor %vm319, %vm320
    %v322 = vsel %vm321, %v314, %v318
    %v323 = vand.u32 2147483647, %v298
    %vm324 = vcmp.eq.f32.partialorder %v323, 8.507059e+37
    %v325 = vand.u32 %v298, 2147483648
    %v326 = vor.u32 1.1754944e-38, %v325
    %v327 = vsel %vm324, %v326, %v322
    %v328 = vmul.f32 %v292, %v327
    %329 = vrot.lane.b32.xlu0 %v229, 64
    %v330 = vpop.permute.xlu0 %329
    %331 = vrot.lane.b32.xlu0 %v232, 64
    %v332 = vpop.permute.xlu0 %331
    %v336 = vsel %vm280, %v313, 0
    %v339 = vsel %vm280, %v328, 0
    %341 = vmatpush.msra.mxu0 0.0
    %342 = vmatpush.msra.mxu0 0.0
    %343 = vmatpush.msra.mxu0 0.0
    %344 = vmatpush.msra.mxu0 0.0
    %345 = vmatpush.msra.mxu0 0.0
    %346 = vmatpush.msra.mxu0 0.0
    %347 = vmatpush.msra.mxu0 0.0
    %348 = vmatpush.msra.mxu0 0.0
    %349 = vmatpush.msra.mxu0 0.0
    %350 = vmatpush.msra.mxu0 0.0
    %351 = vmatpush.msra.mxu0 0.0
    %352 = vmatpush.msra.mxu0 0.0
    %353 = vmatpush.msra.mxu0 0.0
    %354 = vmatpush.msra.mxu0 0.0
    %355 = vmatpush.msra.mxu0 %v332
    %356 = vmatpush.msra.mxu0 %v330
    %357 = vmatmul.f32.gmra.mxu0 %v336
    %v358 = vpop.f32.mrf.mxu0
    %v359 = vadd.f32 0.0, %v358
    %360 = vmatmul.f32.gmra.mxu0 %v339
    %v361 = vpop.f32.mrf.mxu0
    %v362 = vadd.f32 0.0, %v361
    %363 = vdwg.mxu0
    %364 = vrot.lane.b32.xlu0 %v229, 120
    %v365 = vpop.permute.xlu0 %364
    %366 = vrot.lane.b32.xlu0 %v232, 120
    %v367 = vpop.permute.xlu0 %366
    %368 = vrot.lane.b32.xlu0 %v229, 88
    %v369 = vpop.permute.xlu0 %368
    %370 = vrot.lane.b32.xlu0 %v232, 88
    %v371 = vpop.permute.xlu0 %370
    %v372 = vsel %vm244, %v365, 0
    %v374 = vsel %vm244, %v367, 0
    %v376 = vsel %vm244, %v369, 0
    %v378 = vsel %vm244, %v371, 0
    %380 = vmatpush.xpose.msra.mxu0 0.0
    %381 = vmatpush.xpose.msra.mxu0 0.0
    %382 = vmatpush.xpose.msra.mxu0 0.0
    %383 = vmatpush.xpose.msra.mxu0 0.0
    %384 = vmatpush.xpose.msra.mxu0 0.0
    %385 = vmatpush.xpose.msra.mxu0 0.0
    %386 = vmatpush.xpose.msra.mxu0 0.0
    %387 = vmatpush.xpose.msra.mxu0 0.0
    %388 = vmatpush.xpose.msra.mxu0 0.0
    %389 = vmatpush.xpose.msra.mxu0 0.0
    %390 = vmatpush.xpose.msra.mxu0 0.0
    %391 = vmatpush.xpose.msra.mxu0 0.0
    %392 = vmatpush.xpose.msra.mxu0 0.0
    %393 = vmatpush.xpose.msra.mxu0 0.0
    %394 = vmatpush.xpose.msra.mxu0 %v378
    %395 = vmatpush.xpose.msra.mxu0 %v376
    %396 = vmatmul.f32.gmra.mxu0 %v372
    %v397 = vpop.f32.mrf.mxu0
    %v398 = vadd.f32 0.0, %v397
    %399 = vmatmul.f32.gmra.mxu0 %v374
    %v400 = vpop.f32.mrf.mxu0
    %v401 = vadd.f32 0.0, %v400
    %402 = vdwg.mxu0
    %v403 = vmul.f32 %v398, 0.35355338
    %v404 = vmul.f32 %v401, 0.35355338
    %v405 = vadd.f32 %v403, %v192
    %v406 = vadd.f32 %v404, %v193
    %v407 = vsel %vm280, %v405, -inf
    %408 = vmax.xlane.f32.xlu0 %v407
    %v409 = vpop.xlane.xlu0 %408
    %v410 = vsel %vm280, %v406, -inf
    %411 = vmax.xlane.f32.xlu0 %v410
    %v412 = vpop.xlane.xlu0 %411
    %v413 = vsub.f32 %v405, %v409
    %v414 = vsub.f32 %v406, %v412
    %v415 = vmul.f32 %v413, 1.442695
    %v416 = vpow.pop %v415
    %v417 = vmul.f32 %v414, 1.442695
    %v418 = vpow.pop %v417
    %v419 = vsel %vm280, %v416, 0.0
    %420 = vadd.xlane.f32.xlu0 %v419
    %v421 = vpop.xlane.xlu0 %420
    %v422 = vsel %vm280, %v418, 0.0
    %423 = vadd.xlane.f32.xlu0 %v422
    %v424 = vpop.xlane.xlu0 %423
    %v425 = vrcp.pop %v421
    %v426 = vmul.f32 %v421, %v425
    %v427 = vsub.f32 1.0, %v426
    %v428 = vmul.f32 %v425, %v427
    %v429 = vadd.f32 %v425, %v428
    %vm430 = vweird.f32 %v421
    %vm431 = vweird.f32 %v425
    %vm432 = vmor %vm430, %vm431
    %v433 = vsel %vm432, %v425, %v429
    %v434 = vand.u32 2147483647, %v421
    %vm435 = vcmp.eq.f32.partialorder %v434, 8.507059e+37
    %v436 = vand.u32 %v421, 2147483648
    %v437 = vor.u32 1.1754944e-38, %v436
    %v438 = vsel %vm435, %v437, %v433
    %v439 = vmul.f32 %v416, %v438
    %v440 = vrcp.pop %v424
    %v441 = vmul.f32 %v424, %v440
    %v442 = vsub.f32 1.0, %v441
    %v443 = vmul.f32 %v440, %v442
    %v444 = vadd.f32 %v440, %v443
    %vm445 = vweird.f32 %v424
    %vm446 = vweird.f32 %v440
    %vm447 = vmor %vm445, %vm446
    %v448 = vsel %vm447, %v440, %v444
    %v449 = vand.u32 2147483647, %v424
    %vm450 = vcmp.eq.f32.partialorder %v449, 8.507059e+37
    %v451 = vand.u32 %v424, 2147483648
    %v452 = vor.u32 1.1754944e-38, %v451
    %v453 = vsel %vm450, %v452, %v448
    %v454 = vmul.f32 %v418, %v453
    %455 = vrot.lane.b32.xlu0 %v229, 56
    %v456 = vpop.permute.xlu0 %455
    %457 = vrot.lane.b32.xlu0 %v232, 56
    %v458 = vpop.permute.xlu0 %457
    %v462 = vsel %vm280, %v439, 0
    %v465 = vsel %vm280, %v454, 0
    %467 = vmatpush.msra.mxu0 0.0
    %468 = vmatpush.msra.mxu0 0.0
    %469 = vmatpush.msra.mxu0 0.0
    %470 = vmatpush.msra.mxu0 0.0
    %471 = vmatpush.msra.mxu0 0.0
    %472 = vmatpush.msra.mxu0 0.0
    %473 = vmatpush.msra.mxu0 0.0
    %474 = vmatpush.msra.mxu0 0.0
    %475 = vmatpush.msra.mxu0 0.0
    %476 = vmatpush.msra.mxu0 0.0
    %477 = vmatpush.msra.mxu0 0.0
    %478 = vmatpush.msra.mxu0 0.0
    %479 = vmatpush.msra.mxu0 0.0
    %480 = vmatpush.msra.mxu0 0.0
    %481 = vmatpush.msra.mxu0 %v458
    %482 = vmatpush.msra.mxu0 %v456
    %483 = vmatmul.f32.gmra.mxu0 %v462
    %v484 = vpop.f32.mrf.mxu0
    %v485 = vadd.f32 0.0, %v484
    %486 = vmatmul.f32.gmra.mxu0 %v465
    %v487 = vpop.f32.mrf.mxu0
    %v488 = vadd.f32 0.0, %v487
    %489 = vdwg.mxu0
    %v491 = vsel %vm244, %v485, 0
    %v494 = vsel %vm244, %v488, 0
    %496 = vmatpush.msra.mxu0 0.0
    %497 = vmatpush.msra.mxu0 0.0
    %498 = vmatpush.msra.mxu0 0.0
    %499 = vmatpush.msra.mxu0 0.0
    %500 = vmatpush.msra.mxu0 0.0
    %501 = vmatpush.msra.mxu0 0.0
    %502 = vmatpush.msra.mxu0 0.0
    %503 = vmatpush.msra.mxu0 0.0
    %504 = vmatpush.msra.mxu0 0.0
    %505 = vmatpush.msra.mxu0 0.0
    %506 = vmatpush.msra.mxu0 0.0
    %507 = vmatpush.msra.mxu0 0.0
    %508 = vmatpush.msra.mxu0 0.0
    %509 = vmatpush.msra.mxu0 0.0
    %510 = vmatpush.msra.mxu0 0.0
    %511 = vmatpush.msra.mxu0 %v235
    %512 = vmatmul.f32.gmra.mxu0 %v491
    %v513 = vpop.f32.mrf.mxu0
    %v514 = vadd.f32 0.0, %v513
    %515 = vmatmul.f32.gmra.mxu0 %v494
    %v516 = vpop.f32.mrf.mxu0
    %v517 = vadd.f32 0.0, %v516
    %518 = vdwg.mxu0
    %v520 = vsel %vm244, %v359, 0
    %v523 = vsel %vm244, %v362, 0
    %525 = vmatpush.msra.mxu0 0.0
    %526 = vmatpush.msra.mxu0 0.0
    %527 = vmatpush.msra.mxu0 0.0
    %528 = vmatpush.msra.mxu0 0.0
    %529 = vmatpush.msra.mxu0 0.0
    %530 = vmatpush.msra.mxu0 0.0
    %531 = vmatpush.msra.mxu0 0.0
    %532 = vmatpush.msra.mxu0 0.0
    %533 = vmatpush.msra.mxu0 0.0
    %534 = vmatpush.msra.mxu0 0.0
    %535 = vmatpush.msra.mxu0 0.0
    %536 = vmatpush.msra.mxu0 0.0
    %537 = vmatpush.msra.mxu0 0.0
    %538 = vmatpush.msra.mxu0 0.0
    %539 = vmatpush.msra.mxu0 0.0
    %540 = vmatpush.msra.mxu0 %v234
    %541 = vmatmul.f32.gmra.mxu0 %v520
    %v542 = vpop.f32.mrf.mxu0
    %v543 = vadd.f32 %v514, %v542
    %544 = vmatmul.f32.gmra.mxu0 %v523
    %v545 = vpop.f32.mrf.mxu0
    %v546 = vadd.f32 %v517, %v545
    %547 = vdwg.mxu0
    %548 = vrot.lane.b32.xlu0 %v229, 112
    %v549 = vpop.permute.xlu0 %548
    %550 = vrot.lane.b32.xlu0 %v232, 112
    %v551 = vpop.permute.xlu0 %550
    %552 = vrot.lane.b32.xlu0 %v229, 80
    %v553 = vpop.permute.xlu0 %552
    %554 = vrot.lane.b32.xlu0 %v232, 80
    %v555 = vpop.permute.xlu0 %554
    %v556 = vsel %vm244, %v549, 0
    %v558 = vsel %vm244, %v551, 0
    %v560 = vsel %vm244, %v553, 0
    %v562 = vsel %vm244, %v555, 0
    %564 = vmatpush.xpose.msra.mxu0 0.0
    %565 = vmatpush.xpose.msra.mxu0 0.0
    %566 = vmatpush.xpose.msra.mxu0 0.0
    %567 = vmatpush.xpose.msra.mxu0 0.0
    %568 = vmatpush.xpose.msra.mxu0 0.0
    %569 = vmatpush.xpose.msra.mxu0 0.0
    %570 = vmatpush.xpose.msra.mxu0 0.0
    %571 = vmatpush.xpose.msra.mxu0 0.0
    %572 = vmatpush.xpose.msra.mxu0 0.0
    %573 = vmatpush.xpose.msra.mxu0 0.0
    %574 = vmatpush.xpose.msra.mxu0 0.0
    %575 = vmatpush.xpose.msra.mxu0 0.0
    %576 = vmatpush.xpose.msra.mxu0 0.0
    %577 = vmatpush.xpose.msra.mxu0 0.0
    %578 = vmatpush.xpose.msra.mxu0 %v562
    %579 = vmatpush.xpose.msra.mxu0 %v560
    %580 = vmatmul.f32.gmra.mxu0 %v556
    %v581 = vpop.f32.mrf.mxu0
    %v582 = vadd.f32 0.0, %v581
    %583 = vmatmul.f32.gmra.mxu0 %v558
    %v584 = vpop.f32.mrf.mxu0
    %v585 = vadd.f32 0.0, %v584
    %586 = vdwg.mxu0
    %v587 = vmul.f32 %v582, 0.35355338
    %v588 = vmul.f32 %v585, 0.35355338
    %v589 = vadd.f32 %v587, %v192
    %v590 = vadd.f32 %v588, %v193
    %v591 = vsel %vm280, %v589, -inf
    %592 = vmax.xlane.f32.xlu0 %v591
    %v593 = vpop.xlane.xlu0 %592
    %v594 = vsel %vm280, %v590, -inf
    %595 = vmax.xlane.f32.xlu0 %v594
    %v596 = vpop.xlane.xlu0 %595
    %v597 = vsub.f32 %v589, %v593
    %v598 = vsub.f32 %v590, %v596
    %v599 = vmul.f32 %v597, 1.442695
    %v600 = vpow.pop %v599
    %v601 = vmul.f32 %v598, 1.442695
    %v602 = vpow.pop %v601
    %v603 = vsel %vm280, %v600, 0.0
    %604 = vadd.xlane.f32.xlu0 %v603
    %v605 = vpop.xlane.xlu0 %604
    %v606 = vsel %vm280, %v602, 0.0
    %607 = vadd.xlane.f32.xlu0 %v606
    %v608 = vpop.xlane.xlu0 %607
    %v609 = vrcp.pop %v605
    %v610 = vmul.f32 %v605, %v609
    %v611 = vsub.f32 1.0, %v610
    %v612 = vmul.f32 %v609, %v611
    %v613 = vadd.f32 %v609, %v612
    %vm614 = vweird.f32 %v605
    %vm615 = vweird.f32 %v609
    %vm616 = vmor %vm614, %vm615
    %v617 = vsel %vm616, %v609, %v613
    %v618 = vand.u32 2147483647, %v605
    %vm619 = vcmp.eq.f32.partialorder %v618, 8.507059e+37
    %v620 = vand.u32 %v605, 2147483648
    %v621 = vor.u32 1.1754944e-38, %v620
    %v622 = vsel %vm619, %v621, %v617
    %v623 = vmul.f32 %v600, %v622
    %v624 = vrcp.pop %v608
    %v625 = vmul.f32 %v608, %v624
    %v626 = vsub.f32 1.0, %v625
    %v627 = vmul.f32 %v624, %v626
    %v628 = vadd.f32 %v624, %v627
    %vm629 = vweird.f32 %v608
    %vm630 = vweird.f32 %v624
    %vm631 = vmor %vm629, %vm630
    %v632 = vsel %vm631, %v624, %v628
    %v633 = vand.u32 2147483647, %v608
    %vm634 = vcmp.eq.f32.partialorder %v633, 8.507059e+37
    %v635 = vand.u32 %v608, 2147483648
    %v636 = vor.u32 1.1754944e-38, %v635
    %v637 = vsel %vm634, %v636, %v632
    %v638 = vmul.f32 %v602, %v637
    %639 = vrot.lane.b32.xlu0 %v229, 48
    %v640 = vpop.permute.xlu0 %639
    %641 = vrot.lane.b32.xlu0 %v232, 48
    %v642 = vpop.permute.xlu0 %641
    %v646 = vsel %vm280, %v623, 0
    %v649 = vsel %vm280, %v638, 0
    %651 = vmatpush.msra.mxu0 0.0
    %652 = vmatpush.msra.mxu0 0.0
    %653 = vmatpush.msra.mxu0 0.0
    %654 = vmatpush.msra.mxu0 0.0
    %655 = vmatpush.msra.mxu0 0.0
    %656 = vmatpush.msra.mxu0 0.0
    %657 = vmatpush.msra.mxu0 0.0
    %658 = vmatpush.msra.mxu0 0.0
    %659 = vmatpush.msra.mxu0 0.0
    %660 = vmatpush.msra.mxu0 0.0
    %661 = vmatpush.msra.mxu0 0.0
    %662 = vmatpush.msra.mxu0 0.0
    %663 = vmatpush.msra.mxu0 0.0
    %664 = vmatpush.msra.mxu0 0.0
    %665 = vmatpush.msra.mxu0 %v642
    %666 = vmatpush.msra.mxu0 %v640
    %667 = vmatmul.f32.gmra.mxu0 %v646
    %v668 = vpop.f32.mrf.mxu0
    %v669 = vadd.f32 0.0, %v668
    %670 = vmatmul.f32.gmra.mxu0 %v649
    %v671 = vpop.f32.mrf.mxu0
    %v672 = vadd.f32 0.0, %v671
    %673 = vdwg.mxu0
    %v675 = vsel %vm244, %v669, 0
    %v678 = vsel %vm244, %v672, 0
    %680 = vmatpush.msra.mxu0 0.0
    %681 = vmatpush.msra.mxu0 0.0
    %682 = vmatpush.msra.mxu0 0.0
    %683 = vmatpush.msra.mxu0 0.0
    %684 = vmatpush.msra.mxu0 0.0
    %685 = vmatpush.msra.mxu0 0.0
    %686 = vmatpush.msra.mxu0 0.0
    %687 = vmatpush.msra.mxu0 0.0
    %688 = vmatpush.msra.mxu0 0.0
    %689 = vmatpush.msra.mxu0 0.0
    %690 = vmatpush.msra.mxu0 0.0
    %691 = vmatpush.msra.mxu0 0.0
    %692 = vmatpush.msra.mxu0 0.0
    %693 = vmatpush.msra.mxu0 0.0
    %694 = vmatpush.msra.mxu0 0.0
    %695 = vmatpush.msra.mxu0 %v236
    %696 = vmatmul.f32.gmra.mxu0 %v675
    %v697 = vpop.f32.mrf.mxu0
    %v698 = vadd.f32 0.0, %v697
    %699 = vmatmul.f32.gmra.mxu0 %v678
    %v700 = vpop.f32.mrf.mxu0
    %v701 = vadd.f32 0.0, %v700
    %702 = vdwg.mxu0
    %v703 = vadd.f32 %v543, %v698
    %v704 = vadd.f32 %v546, %v701
    %705 = vrot.lane.b32.xlu0 %v229, 104
    %v706 = vpop.permute.xlu0 %705
    %707 = vrot.lane.b32.xlu0 %v232, 104
    %v708 = vpop.permute.xlu0 %707
    %709 = vrot.lane.b32.xlu0 %v229, 72
    %v710 = vpop.permute.xlu0 %709
    %711 = vrot.lane.b32.xlu0 %v232, 72
    %v712 = vpop.permute.xlu0 %711
    %v713 = vsel %vm244, %v706, 0
    %v715 = vsel %vm244, %v708, 0
    %v717 = vsel %vm244, %v710, 0
    %v719 = vsel %vm244, %v712, 0
    %721 = vmatpush.xpose.msra.mxu0 0.0
    %722 = vmatpush.xpose.msra.mxu0 0.0
    %723 = vmatpush.xpose.msra.mxu0 0.0
    %724 = vmatpush.xpose.msra.mxu0 0.0
    %725 = vmatpush.xpose.msra.mxu0 0.0
    %726 = vmatpush.xpose.msra.mxu0 0.0
    %727 = vmatpush.xpose.msra.mxu0 0.0
    %728 = vmatpush.xpose.msra.mxu0 0.0
    %729 = vmatpush.xpose.msra.mxu0 0.0
    %730 = vmatpush.xpose.msra.mxu0 0.0
    %731 = vmatpush.xpose.msra.mxu0 0.0
    %732 = vmatpush.xpose.msra.mxu0 0.0
    %733 = vmatpush.xpose.msra.mxu0 0.0
    %734 = vmatpush.xpose.msra.mxu0 0.0
    %735 = vmatpush.xpose.msra.mxu0 %v719
    %736 = vmatpush.xpose.msra.mxu0 %v717
    %737 = vmatmul.f32.gmra.mxu0 %v713
    %v738 = vpop.f32.mrf.mxu0
    %v739 = vadd.f32 0.0, %v738
    %740 = vmatmul.f32.gmra.mxu0 %v715
    %v741 = vpop.f32.mrf.mxu0
    %v742 = vadd.f32 0.0, %v741
    %743 = vdwg.mxu0
    %v744 = vmul.f32 %v739, 0.35355338
    %v745 = vmul.f32 %v742, 0.35355338
    %v746 = vadd.f32 %v744, %v192
    %v747 = vadd.f32 %v745, %v193
    %v748 = vsel %vm280, %v746, -inf
    %749 = vmax.xlane.f32.xlu0 %v748
    %v750 = vpop.xlane.xlu0 %749
    %v751 = vsel %vm280, %v747, -inf
    %752 = vmax.xlane.f32.xlu0 %v751
    %v753 = vpop.xlane.xlu0 %752
    %v754 = vsub.f32 %v746, %v750
    %v755 = vsub.f32 %v747, %v753
    %v756 = vmul.f32 %v754, 1.442695
    %v757 = vpow.pop %v756
    %v758 = vmul.f32 %v755, 1.442695
    %v759 = vpow.pop %v758
    %v760 = vsel %vm280, %v757, 0.0
    %761 = vadd.xlane.f32.xlu0 %v760
    %v762 = vpop.xlane.xlu0 %761
    %v763 = vsel %vm280, %v759, 0.0
    %764 = vadd.xlane.f32.xlu0 %v763
    %v765 = vpop.xlane.xlu0 %764
    %v766 = vrcp.pop %v762
    %v767 = vmul.f32 %v762, %v766
    %v768 = vsub.f32 1.0, %v767
    %v769 = vmul.f32 %v766, %v768
    %v770 = vadd.f32 %v766, %v769
    %vm771 = vweird.f32 %v762
    %vm772 = vweird.f32 %v766
    %vm773 = vmor %vm771, %vm772
    %v774 = vsel %vm773, %v766, %v770
    %v775 = vand.u32 2147483647, %v762
    %vm776 = vcmp.eq.f32.partialorder %v775, 8.507059e+37
    %v777 = vand.u32 %v762, 2147483648
    %v778 = vor.u32 1.1754944e-38, %v777
    %v779 = vsel %vm776, %v778, %v774
    %v780 = vmul.f32 %v757, %v779
    %v781 = vrcp.pop %v765
    %v782 = vmul.f32 %v765, %v781
    %v783 = vsub.f32 1.0, %v782
    %v784 = vmul.f32 %v781, %v783
    %v785 = vadd.f32 %v781, %v784
    %vm786 = vweird.f32 %v765
    %vm787 = vweird.f32 %v781
    %vm788 = vmor %vm786, %vm787
    %v789 = vsel %vm788, %v781, %v785
    %v790 = vand.u32 2147483647, %v765
    %vm791 = vcmp.eq.f32.partialorder %v790, 8.507059e+37
    %v792 = vand.u32 %v765, 2147483648
    %v793 = vor.u32 1.1754944e-38, %v792
    %v794 = vsel %vm791, %v793, %v789
    %v795 = vmul.f32 %v759, %v794
    %796 = vrot.lane.b32.xlu0 %v229, 40
    %v797 = vpop.permute.xlu0 %796
    %798 = vrot.lane.b32.xlu0 %v232, 40
    %v799 = vpop.permute.xlu0 %798
    %v803 = vsel %vm280, %v780, 0
    %v806 = vsel %vm280, %v795, 0
    %808 = vmatpush.msra.mxu0 0.0
    %809 = vmatpush.msra.mxu0 0.0
    %810 = vmatpush.msra.mxu0 0.0
    %811 = vmatpush.msra.mxu0 0.0
    %812 = vmatpush.msra.mxu0 0.0
    %813 = vmatpush.msra.mxu0 0.0
    %814 = vmatpush.msra.mxu0 0.0
    %815 = vmatpush.msra.mxu0 0.0
    %816 = vmatpush.msra.mxu0 0.0
    %817 = vmatpush.msra.mxu0 0.0
    %818 = vmatpush.msra.mxu0 0.0
    %819 = vmatpush.msra.mxu0 0.0
    %820 = vmatpush.msra.mxu0 0.0
    %821 = vmatpush.msra.mxu0 0.0
    %822 = vmatpush.msra.mxu0 %v799
    %823 = vmatpush.msra.mxu0 %v797
    %824 = vmatmul.f32.gmra.mxu0 %v803
    %v825 = vpop.f32.mrf.mxu0
    %v826 = vadd.f32 0.0, %v825
    %827 = vmatmul.f32.gmra.mxu0 %v806
    %v828 = vpop.f32.mrf.mxu0
    %v829 = vadd.f32 0.0, %v828
    %830 = vdwg.mxu0
    %v832 = vsel %vm244, %v826, 0
    %v835 = vsel %vm244, %v829, 0
    %837 = vmatpush.msra.mxu0 0.0
    %838 = vmatpush.msra.mxu0 0.0
    %839 = vmatpush.msra.mxu0 0.0
    %840 = vmatpush.msra.mxu0 0.0
    %841 = vmatpush.msra.mxu0 0.0
    %842 = vmatpush.msra.mxu0 0.0
    %843 = vmatpush.msra.mxu0 0.0
    %844 = vmatpush.msra.mxu0 0.0
    %845 = vmatpush.msra.mxu0 0.0
    %846 = vmatpush.msra.mxu0 0.0
    %847 = vmatpush.msra.mxu0 0.0
    %848 = vmatpush.msra.mxu0 0.0
    %849 = vmatpush.msra.mxu0 0.0
    %850 = vmatpush.msra.mxu0 0.0
    %851 = vmatpush.msra.mxu0 0.0
    %852 = vmatpush.msra.mxu0 %v237
    %853 = vmatmul.f32.gmra.mxu0 %v832
    %v854 = vpop.f32.mrf.mxu0
    %v855 = vadd.f32 0.0, %v854
    %856 = vmatmul.f32.gmra.mxu0 %v835
    %v857 = vpop.f32.mrf.mxu0
    %v858 = vadd.f32 0.0, %v857
    %859 = vdwg.mxu0
    %v860 = vadd.f32 %v703, %v855
    %v861 = vadd.f32 %v704, %v858
    %v862 = vld [vmem:[#allocation7] sm:$0x1]
    %v864 = vperm.slane %v862, 0
    %v866 = vadd.f32 %v860, %v864
    %v867 = vadd.f32 %v861, %v864
    %v868 = vld [vmem:[#allocation11] sm:$0x3]
    %v869 = vadd.f32 %v194, %v866
    %v870 = vadd.f32 %v195, %v867
    %v871 = vsel %vm204, %v869, 0.0
    %872 = vadd.xlane.f32.xlu0 %v871
    %v873 = vpop.xlane.xlu0 %872
    %v874 = vsel %vm204, %v870, 0.0
    %875 = vadd.xlane.f32.xlu0 %v874
    %v876 = vpop.xlane.xlu0 %875
    %v877 = vrcp.pop 32.0
    %v878 = vmul.f32 32.0, %v877
    %v879 = vsub.f32 1.0, %v878
    %v880 = vmul.f32 %v877, %v879
    %v881 = vadd.f32 %v877, %v880
    %vm882 = vweird.f32 %v877
    %v883 = vsel %vm882, %v877, %v881
    %v884 = vmul.f32 %v873, %v883
    %v885 = vmul.f32 %v876, %v883
    %v886 = vsub.f32 %v869, %v884
    %v887 = vsub.f32 %v870, %v885
    %v888 = vmul.f32 %v886, %v886
    %v889 = vmul.f32 %v887, %v887
    %v890 = vsel %vm204, %v888, 0.0
    %891 = vadd.xlane.f32.xlu0 %v890
    %v892 = vpop.xlane.xlu0 %891
    %v893 = vsel %vm204, %v889, 0.0
    %894 = vadd.xlane.f32.xlu0 %v893
    %v895 = vpop.xlane.xlu0 %894
    %v896 = vmul.f32 %v892, %v883
    %v897 = vmul.f32 %v895, %v883
    %v898 = vadd.f32 %v896, 1e-05
    %v899 = vadd.f32 %v897, 1e-05
    %v900 = vrsqrt.pop %v898
    %v901 = vmul.f32 %v900, %v898
    %v902 = vmul.f32 %v901, %v900
    %v903 = vmul.f32 0.5, %v902
    %v904 = vsub.f32 1.5, %v903
    %v905 = vmul.f32 %v900, %v904
    %vm906 = vweird.f32 %v898
    %vm907 = vweird.f32 %v900
    %vm908 = vmor %vm906, %vm907
    %v909 = vsel %vm908, %v900, %v905
    %v910 = vrsqrt.pop %v899
    %v911 = vmul.f32 %v910, %v899
    %v912 = vmul.f32 %v911, %v910
    %v913 = vmul.f32 0.5, %v912
    %v914 = vsub.f32 1.5, %v913
    %v915 = vmul.f32 %v910, %v914
    %vm916 = vweird.f32 %v899
    %vm917 = vweird.f32 %v910
    %vm918 = vmor %vm916, %vm917
    %v919 = vsel %vm918, %v910, %v915
    %v920 = vmul.f32 %v886, %v909
    %v921 = vmul.f32 %v887, %v919
    %v922 = vperm.slane %v868, 0
    %v923 = vmul.f32 %v920, %v922
    %v924 = vmul.f32 %v921, %v922
    %v925 = vperm.slane %v868, 1
    %v926 = vadd.f32 %v923, %v925
    %v927 = vadd.f32 %v924, %v925
    %v928 = vld [vmem:[%s5] sm:$0xff]
    %v929 = vld [vmem:[%s5 + $0x8] sm:$0xff]
    %v930 = vld [vmem:[%s5 + $0x10] sm:$0xff]
    %v931 = vld [vmem:[%s5 + $0x18] sm:$0xff]
    %v932 = vld [vmem:[#allocation8] sm:$0x1]
    %v934 = vperm.slane %v932, 0
    %v937 = vsel %vm204, %v926, 0
    %v940 = vsel %vm204, %v927, 0
    %942 = vmatpush.msra.mxu0 0.0
    %943 = vmatpush.msra.mxu0 0.0
    %944 = vmatpush.msra.mxu0 0.0
    %945 = vmatpush.msra.mxu0 0.0
    %946 = vmatpush.msra.mxu0 0.0
    %947 = vmatpush.msra.mxu0 0.0
    %948 = vmatpush.msra.mxu0 0.0
    %949 = vmatpush.msra.mxu0 0.0
    %950 = vmatpush.msra.mxu0 0.0
    %951 = vmatpush.msra.mxu0 0.0
    %952 = vmatpush.msra.mxu0 0.0
    %953 = vmatpush.msra.mxu0 0.0
    %954 = vmatpush.msra.mxu0 %v931
    %955 = vmatpush.msra.mxu0 %v930
    %956 = vmatpush.msra.mxu0 %v929
    %957 = vmatpush.msra.mxu0 %v928
    %958 = vmatmul.f32.gmra.mxu0 %v937
    %v959 = vpop.f32.mrf.mxu0
    %v960 = vadd.f32 %v934, %v959
    %961 = vmatmul.f32.gmra.mxu0 %v940
    %v962 = vpop.f32.mrf.mxu0
    %v963 = vadd.f32 %v934, %v962
    %964 = vdwg.mxu0
    %v965 = vmax.f32 %v960, 0.0
    %v966 = vmax.f32 %v963, 0.0
    %v967 = vld [vmem:[%s7] sm:$0xff]
    %v968 = vld [vmem:[%s7 + $0x8] sm:$0xff]
    %v969 = vld [vmem:[%s7 + $0x10] sm:$0xff]
    %v970 = vld [vmem:[%s7 + $0x18] sm:$0xff]
    %v971 = vld [vmem:[%s7 + $0x20] sm:$0xff]
    %v972 = vld [vmem:[%s7 + $0x28] sm:$0xff]
    %v973 = vld [vmem:[%s7 + $0x30] sm:$0xff]
    %v974 = vld [vmem:[%s7 + $0x38] sm:$0xff]
    %v975 = vld [vmem:[#allocation10] sm:$0x1]
    %v977 = vperm.slane %v975, 0
    %vm979 = vcmask 523264
    %v981 = vsel %vm979, %v965, 0
    %v984 = vsel %vm979, %v966, 0
    %986 = vmatpush.msra.mxu0 0.0
    %987 = vmatpush.msra.mxu0 0.0
    %988 = vmatpush.msra.mxu0 0.0
    %989 = vmatpush.msra.mxu0 0.0
    %990 = vmatpush.msra.mxu0 0.0
    %991 = vmatpush.msra.mxu0 0.0
    %992 = vmatpush.msra.mxu0 0.0
    %993 = vmatpush.msra.mxu0 0.0
    %994 = vmatpush.msra.mxu0 %v974
    %995 = vmatpush.msra.mxu0 %v973
    %996 = vmatpush.msra.mxu0 %v972
    %997 = vmatpush.msra.mxu0 %v971
    %998 = vmatpush.msra.mxu0 %v970
    %999 = vmatpush.msra.mxu0 %v969
    %1000 = vmatpush.msra.mxu0 %v968
    %1001 = vmatpush.msra.mxu0 %v967
    %1002 = vmatmul.f32.gmra.mxu0 %v981
    %v1003 = vpop.f32.mrf.mxu0
    %v1004 = vadd.f32 %v977, %v1003
    %1005 = vmatmul.f32.gmra.mxu0 %v984
    %v1006 = vpop.f32.mrf.mxu0
    %v1007 = vadd.f32 %v977, %v1006
    %1008 = vdwg.mxu0
    %v1009 = vld [vmem:[%s10] sm:$0x3]
    %v1010 = vadd.f32 %v926, %v1004
    %v1011 = vadd.f32 %v927, %v1007
    %v1012 = vsel %vm204, %v1010, 0.0
    %1013 = vadd.xlane.f32.xlu0 %v1012
    %v1014 = vpop.xlane.xlu0 %1013
    %v1015 = vsel %vm204, %v1011, 0.0
    %1016 = vadd.xlane.f32.xlu0 %v1015
    %v1017 = vpop.xlane.xlu0 %1016
    %v1018 = vmul.f32 %v1014, %v883
    %v1019 = vmul.f32 %v1017, %v883
    %v1020 = vsub.f32 %v1010, %v1018
    %v1021 = vsub.f32 %v1011, %v1019
    %v1022 = vmul.f32 %v1020, %v1020
    %v1023 = vmul.f32 %v1021, %v1021
    %v1024 = vsel %vm204, %v1022, 0.0
    %1025 = vadd.xlane.f32.xlu0 %v1024
    %v1026 = vpop.xlane.xlu0 %1025
    %v1027 = vsel %vm204, %v1023, 0.0
    %1028 = vadd.xlane.f32.xlu0 %v1027
    %v1029 = vpop.xlane.xlu0 %1028
    %v1030 = vmul.f32 %v1026, %v883
    %v1031 = vmul.f32 %v1029, %v883
    %v1032 = vadd.f32 %v1030, 1e-05
    %v1033 = vadd.f32 %v1031, 1e-05
    %v1034 = vrsqrt.pop %v1032
    %v1035 = vmul.f32 %v1034, %v1032
    %v1036 = vmul.f32 %v1035, %v1034
    %v1037 = vmul.f32 0.5, %v1036
    %v1038 = vsub.f32 1.5, %v1037
    %v1039 = vmul.f32 %v1034, %v1038
    %vm1040 = vweird.f32 %v1032
    %vm1041 = vweird.f32 %v1034
    %vm1042 = vmor %vm1040, %vm1041
    %v1043 = vsel %vm1042, %v1034, %v1039
    %v1044 = vrsqrt.pop %v1033
    %v1045 = vmul.f32 %v1044, %v1033
    %v1046 = vmul.f32 %v1045, %v1044
    %v1047 = vmul.f32 0.5, %v1046
    %v1048 = vsub.f32 1.5, %v1047
    %v1049 = vmul.f32 %v1044, %v1048
    %vm1050 = vweird.f32 %v1033
    %vm1051 = vweird.f32 %v1044
    %vm1052 = vmor %vm1050, %vm1051
    %v1053 = vsel %vm1052, %v1044, %v1049
    %v1054 = vmul.f32 %v1020, %v1043
    %v1055 = vmul.f32 %v1021, %v1053
    %v1056 = vperm.slane %v1009, 0
    %v1057 = vmul.f32 %v1054, %v1056
    %v1058 = vmul.f32 %v1055, %v1056
    %v1059 = vperm.slane %v1009, 1
    %v1060 = vadd.f32 %v1057, %v1059
    %v1061 = vadd.f32 %v1058, %v1059
    %s1062 = scalar_lea.vmem %s1, 32
    %v1063 = vld [vmem:[%s1062] sm:$0xff]
    %v1064 = vld [vmem:[%s1062 + $0x8] sm:$0xff]
    %v1065 = vld [vmem:[%s1062 + $0x10] sm:$0xff]
    %v1066 = vld [vmem:[%s1062 + $0x18] sm:$0xff]
    %s1067 = scalar_lea.vmem [#allocation5], 1
    %v1068 = vld [vmem:[%s1067] sm:$0x1]
    %v1070 = vperm.slane %v1068, 0
    %v1073 = vsel %vm204, %v1060, 0
    %v1076 = vsel %vm204, %v1061, 0
    %1078 = vmatpush.msra.mxu0 0.0
    %1079 = vmatpush.msra.mxu0 0.0
    %1080 = vmatpush.msra.mxu0 0.0
    %1081 = vmatpush.msra.mxu0 0.0
    %1082 = vmatpush.msra.mxu0 0.0
    %1083 = vmatpush.msra.mxu0 0.0
    %1084 = vmatpush.msra.mxu0 0.0
    %1085 = vmatpush.msra.mxu0 0.0
    %1086 = vmatpush.msra.mxu0 0.0
    %1087 = vmatpush.msra.mxu0 0.0
    %1088 = vmatpush.msra.mxu0 0.0
    %1089 = vmatpush.msra.mxu0 0.0
    %1090 = vmatpush.msra.mxu0 %v1066
    %1091 = vmatpush.msra.mxu0 %v1065
    %1092 = vmatpush.msra.mxu0 %v1064
    %1093 = vmatpush.msra.mxu0 %v1063
    %1094 = vmatmul.f32.gmra.mxu0 %v1073
    %v1095 = vpop.f32.mrf.mxu0
    %v1096 = vadd.f32 %v1070, %v1095
    %1097 = vmatmul.f32.gmra.mxu0 %v1076
    %v1098 = vpop.f32.mrf.mxu0
    %v1099 = vadd.f32 %v1070, %v1098
    %1100 = vdwg.mxu0
    %s1101 = scalar_lea.vmem %s3, 32
    %v1102 = vld [vmem:[%s1101] sm:$0xff]
    %v1103 = vld [vmem:[%s1101 + $0x8] sm:$0xff]
    %v1104 = vld [vmem:[%s1101 + $0x10] sm:$0xff]
    %v1105 = vld [vmem:[%s1101 + $0x18] sm:$0xff]
    %1108 = vrot.lane.b32.xlu0 %v1096, 96
    %v1109 = vpop.permute.xlu0 %1108
    %1110 = vrot.lane.b32.xlu0 %v1099, 96
    %v1111 = vpop.permute.xlu0 %1110
    %v1112 = vsel %vm244, %v1096, 0
    %v1114 = vsel %vm244, %v1099, 0
    %v1116 = vsel %vm244, %v1109, 0
    %v1118 = vsel %vm244, %v1111, 0
    %1120 = vmatpush.xpose.msra.mxu0 0.0
    %1121 = vmatpush.xpose.msra.mxu0 0.0
    %1122 = vmatpush.xpose.msra.mxu0 0.0
    %1123 = vmatpush.xpose.msra.mxu0 0.0
    %1124 = vmatpush.xpose.msra.mxu0 0.0
    %1125 = vmatpush.xpose.msra.mxu0 0.0
    %1126 = vmatpush.xpose.msra.mxu0 0.0
    %1127 = vmatpush.xpose.msra.mxu0 0.0
    %1128 = vmatpush.xpose.msra.mxu0 0.0
    %1129 = vmatpush.xpose.msra.mxu0 0.0
    %1130 = vmatpush.xpose.msra.mxu0 0.0
    %1131 = vmatpush.xpose.msra.mxu0 0.0
    %1132 = vmatpush.xpose.msra.mxu0 0.0
    %1133 = vmatpush.xpose.msra.mxu0 0.0
    %1134 = vmatpush.xpose.msra.mxu0 %v1118
    %1135 = vmatpush.xpose.msra.mxu0 %v1116
    %1136 = vmatmul.f32.gmra.mxu0 %v1112
    %v1137 = vpop.f32.mrf.mxu0
    %v1138 = vadd.f32 0.0, %v1137
    %1139 = vmatmul.f32.gmra.mxu0 %v1114
    %v1140 = vpop.f32.mrf.mxu0
    %v1141 = vadd.f32 0.0, %v1140
    %1142 = vdwg.mxu0
    %v1143 = vmul.f32 %v1138, 0.35355338
    %v1144 = vmul.f32 %v1141, 0.35355338
    %v1145 = vadd.f32 %v1143, %v192
    %v1146 = vadd.f32 %v1144, %v193
    %v1147 = vsel %vm280, %v1145, -inf
    %1148 = vmax.xlane.f32.xlu0 %v1147
    %v1149 = vpop.xlane.xlu0 %1148
    %v1150 = vsel %vm280, %v1146, -inf
    %1151 = vmax.xlane.f32.xlu0 %v1150
    %v1152 = vpop.xlane.xlu0 %1151
    %v1153 = vsub.f32 %v1145, %v1149
    %v1154 = vsub.f32 %v1146, %v1152
    %v1155 = vmul.f32 %v1153, 1.442695
    %v1156 = vpow.pop %v1155
    %v1157 = vmul.f32 %v1154, 1.442695
    %v1158 = vpow.pop %v1157
    %v1159 = vsel %vm280, %v1156, 0.0
    %1160 = vadd.xlane.f32.xlu0 %v1159
    %v1161 = vpop.xlane.xlu0 %1160
    %v1162 = vsel %vm280, %v1158, 0.0
    %1163 = vadd.xlane.f32.xlu0 %v1162
    %v1164 = vpop.xlane.xlu0 %1163
    %v1165 = vrcp.pop %v1161
    %v1166 = vmul.f32 %v1161, %v1165
    %v1167 = vsub.f32 1.0, %v1166
    %v1168 = vmul.f32 %v1165, %v1167
    %v1169 = vadd.f32 %v1165, %v1168
    %vm1170 = vweird.f32 %v1161
    %vm1171 = vweird.f32 %v1165
    %vm1172 = vmor %vm1170, %vm1171
    %v1173 = vsel %vm1172, %v1165, %v1169
    %v1174 = vand.u32 2147483647, %v1161
    %vm1175 = vcmp.eq.f32.partialorder %v1174, 8.507059e+37
    %v1176 = vand.u32 %v1161, 2147483648
    %v1177 = vor.u32 1.1754944e-38, %v1176
    %v1178 = vsel %vm1175, %v1177, %v1173
    %v1179 = vmul.f32 %v1156, %v1178
    %v1180 = vrcp.pop %v1164
    %v1181 = vmul.f32 %v1164, %v1180
    %v1182 = vsub.f32 1.0, %v1181
    %v1183 = vmul.f32 %v1180, %v1182
    %v1184 = vadd.f32 %v1180, %v1183
    %vm1185 = vweird.f32 %v1164
    %vm1186 = vweird.f32 %v1180
    %vm1187 = vmor %vm1185, %vm1186
    %v1188 = vsel %vm1187, %v1180, %v1184
    %v1189 = vand.u32 2147483647, %v1164
    %vm1190 = vcmp.eq.f32.partialorder %v1189, 8.507059e+37
    %v1191 = vand.u32 %v1164, 2147483648
    %v1192 = vor.u32 1.1754944e-38, %v1191
    %v1193 = vsel %vm1190, %v1192, %v1188
    %v1194 = vmul.f32 %v1158, %v1193
    %1195 = vrot.lane.b32.xlu0 %v1096, 64
    %v1196 = vpop.permute.xlu0 %1195
    %1197 = vrot.lane.b32.xlu0 %v1099, 64
    %v1198 = vpop.permute.xlu0 %1197
    %v1202 = vsel %vm280, %v1179, 0
    %v1205 = vsel %vm280, %v1194, 0
    %1207 = vmatpush.msra.mxu0 0.0
    %1208 = vmatpush.msra.mxu0 0.0
    %1209 = vmatpush.msra.mxu0 0.0
    %1210 = vmatpush.msra.mxu0 0.0
    %1211 = vmatpush.msra.mxu0 0.0
    %1212 = vmatpush.msra.mxu0 0.0
    %1213 = vmatpush.msra.mxu0 0.0
    %1214 = vmatpush.msra.mxu0 0.0
    %1215 = vmatpush.msra.mxu0 0.0
    %1216 = vmatpush.msra.mxu0 0.0
    %1217 = vmatpush.msra.mxu0 0.0
    %1218 = vmatpush.msra.mxu0 0.0
    %1219 = vmatpush.msra.mxu0 0.0
    %1220 = vmatpush.msra.mxu0 0.0
    %1221 = vmatpush.msra.mxu0 %v1198
    %1222 = vmatpush.msra.mxu0 %v1196
    %1223 = vmatmul.f32.gmra.mxu0 %v1202
    %v1224 = vpop.f32.mrf.mxu0
    %v1225 = vadd.f32 0.0, %v1224
    %1226 = vmatmul.f32.gmra.mxu0 %v1205
    %v1227 = vpop.f32.mrf.mxu0
    %v1228 = vadd.f32 0.0, %v1227
    %1229 = vdwg.mxu0
    %1230 = vrot.lane.b32.xlu0 %v1096, 120
    %v1231 = vpop.permute.xlu0 %1230
    %1232 = vrot.lane.b32.xlu0 %v1099, 120
    %v1233 = vpop.permute.xlu0 %1232
    %1234 = vrot.lane.b32.xlu0 %v1096, 88
    %v1235 = vpop.permute.xlu0 %1234
    %1236 = vrot.lane.b32.xlu0 %v1099, 88
    %v1237 = vpop.permute.xlu0 %1236
    %v1238 = vsel %vm244, %v1231, 0
    %v1240 = vsel %vm244, %v1233, 0
    %v1242 = vsel %vm244, %v1235, 0
    %v1244 = vsel %vm244, %v1237, 0
    %1246 = vmatpush.xpose.msra.mxu0 0.0
    %1247 = vmatpush.xpose.msra.mxu0 0.0
    %1248 = vmatpush.xpose.msra.mxu0 0.0
    %1249 = vmatpush.xpose.msra.mxu0 0.0
    %1250 = vmatpush.xpose.msra.mxu0 0.0
    %1251 = vmatpush.xpose.msra.mxu0 0.0
    %1252 = vmatpush.xpose.msra.mxu0 0.0
    %1253 = vmatpush.xpose.msra.mxu0 0.0
    %1254 = vmatpush.xpose.msra.mxu0 0.0
    %1255 = vmatpush.xpose.msra.mxu0 0.0
    %1256 = vmatpush.xpose.msra.mxu0 0.0
    %1257 = vmatpush.xpose.msra.mxu0 0.0
    %1258 = vmatpush.xpose.msra.mxu0 0.0
    %1259 = vmatpush.xpose.msra.mxu0 0.0
    %1260 = vmatpush.xpose.msra.mxu0 %v1244
    %1261 = vmatpush.xpose.msra.mxu0 %v1242
    %1262 = vmatmul.f32.gmra.mxu0 %v1238
    %v1263 = vpop.f32.mrf.mxu0
    %v1264 = vadd.f32 0.0, %v1263
    %1265 = vmatmul.f32.gmra.mxu0 %v1240
    %v1266 = vpop.f32.mrf.mxu0
    %v1267 = vadd.f32 0.0, %v1266
    %1268 = vdwg.mxu0
    %v1269 = vmul.f32 %v1264, 0.35355338
    %v1270 = vmul.f32 %v1267, 0.35355338
    %v1271 = vadd.f32 %v1269, %v192
    %v1272 = vadd.f32 %v1270, %v193
    %v1273 = vsel %vm280, %v1271, -inf
    %1274 = vmax.xlane.f32.xlu0 %v1273
    %v1275 = vpop.xlane.xlu0 %1274
    %v1276 = vsel %vm280, %v1272, -inf
    %1277 = vmax.xlane.f32.xlu0 %v1276
    %v1278 = vpop.xlane.xlu0 %1277
    %v1279 = vsub.f32 %v1271, %v1275
    %v1280 = vsub.f32 %v1272, %v1278
    %v1281 = vmul.f32 %v1279, 1.442695
    %v1282 = vpow.pop %v1281
    %v1283 = vmul.f32 %v1280, 1.442695
    %v1284 = vpow.pop %v1283
    %v1285 = vsel %vm280, %v1282, 0.0
    %1286 = vadd.xlane.f32.xlu0 %v1285
    %v1287 = vpop.xlane.xlu0 %1286
    %v1288 = vsel %vm280, %v1284, 0.0
    %1289 = vadd.xlane.f32.xlu0 %v1288
    %v1290 = vpop.xlane.xlu0 %1289
    %v1291 = vrcp.pop %v1287
    %v1292 = vmul.f32 %v1287, %v1291
    %v1293 = vsub.f32 1.0, %v1292
    %v1294 = vmul.f32 %v1291, %v1293
    %v1295 = vadd.f32 %v1291, %v1294
    %vm1296 = vweird.f32 %v1287
    %vm1297 = vweird.f32 %v1291
    %vm1298 = vmor %vm1296, %vm1297
    %v1299 = vsel %vm1298, %v1291, %v1295
    %v1300 = vand.u32 2147483647, %v1287
    %vm1301 = vcmp.eq.f32.partialorder %v1300, 8.507059e+37
    %v1302 = vand.u32 %v1287, 2147483648
    %v1303 = vor.u32 1.1754944e-38, %v1302
    %v1304 = vsel %vm1301, %v1303, %v1299
    %v1305 = vmul.f32 %v1282, %v1304
    %v1306 = vrcp.pop %v1290
    %v1307 = vmul.f32 %v1290, %v1306
    %v1308 = vsub.f32 1.0, %v1307
    %v1309 = vmul.f32 %v1306, %v1308
    %v1310 = vadd.f32 %v1306, %v1309
    %vm1311 = vweird.f32 %v1290
    %vm1312 = vweird.f32 %v1306
    %vm1313 = vmor %vm1311, %vm1312
    %v1314 = vsel %vm1313, %v1306, %v1310
    %v1315 = vand.u32 2147483647, %v1290
    %vm1316 = vcmp.eq.f32.partialorder %v1315, 8.507059e+37
    %v1317 = vand.u32 %v1290, 2147483648
    %v1318 = vor.u32 1.1754944e-38, %v1317
    %v1319 = vsel %vm1316, %v1318, %v1314
    %v1320 = vmul.f32 %v1284, %v1319
    %1321 = vrot.lane.b32.xlu0 %v1096, 56
    %v1322 = vpop.permute.xlu0 %1321
    %1323 = vrot.lane.b32.xlu0 %v1099, 56
    %v1324 = vpop.permute.xlu0 %1323
    %v1328 = vsel %vm280, %v1305, 0
    %v1331 = vsel %vm280, %v1320, 0
    %1333 = vmatpush.msra.mxu0 0.0
    %1334 = vmatpush.msra.mxu0 0.0
    %1335 = vmatpush.msra.mxu0 0.0
    %1336 = vmatpush.msra.mxu0 0.0
    %1337 = vmatpush.msra.mxu0 0.0
    %1338 = vmatpush.msra.mxu0 0.0
    %1339 = vmatpush.msra.mxu0 0.0
    %1340 = vmatpush.msra.mxu0 0.0
    %1341 = vmatpush.msra.mxu0 0.0
    %1342 = vmatpush.msra.mxu0 0.0
    %1343 = vmatpush.msra.mxu0 0.0
    %1344 = vmatpush.msra.mxu0 0.0
    %1345 = vmatpush.msra.mxu0 0.0
    %1346 = vmatpush.msra.mxu0 0.0
    %1347 = vmatpush.msra.mxu0 %v1324
    %1348 = vmatpush.msra.mxu0 %v1322
    %1349 = vmatmul.f32.gmra.mxu0 %v1328
    %v1350 = vpop.f32.mrf.mxu0
    %v1351 = vadd.f32 0.0, %v1350
    %1352 = vmatmul.f32.gmra.mxu0 %v1331
    %v1353 = vpop.f32.mrf.mxu0
    %v1354 = vadd.f32 0.0, %v1353
    %1355 = vdwg.mxu0
    %v1357 = vsel %vm244, %v1351, 0
    %v1360 = vsel %vm244, %v1354, 0
    %1362 = vmatpush.msra.mxu0 0.0
    %1363 = vmatpush.msra.mxu0 0.0
    %1364 = vmatpush.msra.mxu0 0.0
    %1365 = vmatpush.msra.mxu0 0.0
    %1366 = vmatpush.msra.mxu0 0.0
    %1367 = vmatpush.msra.mxu0 0.0
    %1368 = vmatpush.msra.mxu0 0.0
    %1369 = vmatpush.msra.mxu0 0.0
    %1370 = vmatpush.msra.mxu0 0.0
    %1371 = vmatpush.msra.mxu0 0.0
    %1372 = vmatpush.msra.mxu0 0.0
    %1373 = vmatpush.msra.mxu0 0.0
    %1374 = vmatpush.msra.mxu0 0.0
    %1375 = vmatpush.msra.mxu0 0.0
    %1376 = vmatpush.msra.mxu0 0.0
    %1377 = vmatpush.msra.mxu0 %v1103
    %1378 = vmatmul.f32.gmra.mxu0 %v1357
    %v1379 = vpop.f32.mrf.mxu0
    %v1380 = vadd.f32 0.0, %v1379
    %1381 = vmatmul.f32.gmra.mxu0 %v1360
    %v1382 = vpop.f32.mrf.mxu0
    %v1383 = vadd.f32 0.0, %v1382
    %1384 = vdwg.mxu0
    %v1386 = vsel %vm244, %v1225, 0
    %v1389 = vsel %vm244, %v1228, 0
    %1391 = vmatpush.msra.mxu0 0.0
    %1392 = vmatpush.msra.mxu0 0.0
    %1393 = vmatpush.msra.mxu0 0.0
    %1394 = vmatpush.msra.mxu0 0.0
    %1395 = vmatpush.msra.mxu0 0.0
    %1396 = vmatpush.msra.mxu0 0.0
    %1397 = vmatpush.msra.mxu0 0.0
    %1398 = vmatpush.msra.mxu0 0.0
    %1399 = vmatpush.msra.mxu0 0.0
    %1400 = vmatpush.msra.mxu0 0.0
    %1401 = vmatpush.msra.mxu0 0.0
    %1402 = vmatpush.msra.mxu0 0.0
    %1403 = vmatpush.msra.mxu0 0.0
    %1404 = vmatpush.msra.mxu0 0.0
    %1405 = vmatpush.msra.mxu0 0.0
    %1406 = vmatpush.msra.mxu0 %v1102
    %1407 = vmatmul.f32.gmra.mxu0 %v1386
    %v1408 = vpop.f32.mrf.mxu0
    %v1409 = vadd.f32 %v1380, %v1408
    %1410 = vmatmul.f32.gmra.mxu0 %v1389
    %v1411 = vpop.f32.mrf.mxu0
    %v1412 = vadd.f32 %v1383, %v1411
    %1413 = vdwg.mxu0
    %1414 = vrot.lane.b32.xlu0 %v1096, 112
    %v1415 = vpop.permute.xlu0 %1414
    %1416 = vrot.lane.b32.xlu0 %v1099, 112
    %v1417 = vpop.permute.xlu0 %1416
    %1418 = vrot.lane.b32.xlu0 %v1096, 80
    %v1419 = vpop.permute.xlu0 %1418
    %1420 = vrot.lane.b32.xlu0 %v1099, 80
    %v1421 = vpop.permute.xlu0 %1420
    %v1422 = vsel %vm244, %v1415, 0
    %v1424 = vsel %vm244, %v1417, 0
    %v1426 = vsel %vm244, %v1419, 0
    %v1428 = vsel %vm244, %v1421, 0
    %1430 = vmatpush.xpose.msra.mxu0 0.0
    %1431 = vmatpush.xpose.msra.mxu0 0.0
    %1432 = vmatpush.xpose.msra.mxu0 0.0
    %1433 = vmatpush.xpose.msra.mxu0 0.0
    %1434 = vmatpush.xpose.msra.mxu0 0.0
    %1435 = vmatpush.xpose.msra.mxu0 0.0
    %1436 = vmatpush.xpose.msra.mxu0 0.0
    %1437 = vmatpush.xpose.msra.mxu0 0.0
    %1438 = vmatpush.xpose.msra.mxu0 0.0
    %1439 = vmatpush.xpose.msra.mxu0 0.0
    %1440 = vmatpush.xpose.msra.mxu0 0.0
    %1441 = vmatpush.xpose.msra.mxu0 0.0
    %1442 = vmatpush.xpose.msra.mxu0 0.0
    %1443 = vmatpush.xpose.msra.mxu0 0.0
    %1444 = vmatpush.xpose.msra.mxu0 %v1428
    %1445 = vmatpush.xpose.msra.mxu0 %v1426
    %1446 = vmatmul.f32.gmra.mxu0 %v1422
    %v1447 = vpop.f32.mrf.mxu0
    %v1448 = vadd.f32 0.0, %v1447
    %1449 = vmatmul.f32.gmra.mxu0 %v1424
    %v1450 = vpop.f32.mrf.mxu0
    %v1451 = vadd.f32 0.0, %v1450
    %1452 = vdwg.mxu0
    %v1453 = vmul.f32 %v1448, 0.35355338
    %v1454 = vmul.f32 %v1451, 0.35355338
    %v1455 = vadd.f32 %v1453, %v192
    %v1456 = vadd.f32 %v1454, %v193
    %v1457 = vsel %vm280, %v1455, -inf
    %1458 = vmax.xlane.f32.xlu0 %v1457
    %v1459 = vpop.xlane.xlu0 %1458
    %v1460 = vsel %vm280, %v1456, -inf
    %1461 = vmax.xlane.f32.xlu0 %v1460
    %v1462 = vpop.xlane.xlu0 %1461
    %v1463 = vsub.f32 %v1455, %v1459
    %v1464 = vsub.f32 %v1456, %v1462
    %v1465 = vmul.f32 %v1463, 1.442695
    %v1466 = vpow.pop %v1465
    %v1467 = vmul.f32 %v1464, 1.442695
    %v1468 = vpow.pop %v1467
    %v1469 = vsel %vm280, %v1466, 0.0
    %1470 = vadd.xlane.f32.xlu0 %v1469
    %v1471 = vpop.xlane.xlu0 %1470
    %v1472 = vsel %vm280, %v1468, 0.0
    %1473 = vadd.xlane.f32.xlu0 %v1472
    %v1474 = vpop.xlane.xlu0 %1473
    %v1475 = vrcp.pop %v1471
    %v1476 = vmul.f32 %v1471, %v1475
    %v1477 = vsub.f32 1.0, %v1476
    %v1478 = vmul.f32 %v1475, %v1477
    %v1479 = vadd.f32 %v1475, %v1478
    %vm1480 = vweird.f32 %v1471
    %vm1481 = vweird.f32 %v1475
    %vm1482 = vmor %vm1480, %vm1481
    %v1483 = vsel %vm1482, %v1475, %v1479
    %v1484 = vand.u32 2147483647, %v1471
    %vm1485 = vcmp.eq.f32.partialorder %v1484, 8.507059e+37
    %v1486 = vand.u32 %v1471, 2147483648
    %v1487 = vor.u32 1.1754944e-38, %v1486
    %v1488 = vsel %vm1485, %v1487, %v1483
    %v1489 = vmul.f32 %v1466, %v1488
    %v1490 = vrcp.pop %v1474
    %v1491 = vmul.f32 %v1474, %v1490
    %v1492 = vsub.f32 1.0, %v1491
    %v1493 = vmul.f32 %v1490, %v1492
    %v1494 = vadd.f32 %v1490, %v1493
    %vm1495 = vweird.f32 %v1474
    %vm1496 = vweird.f32 %v1490
    %vm1497 = vmor %vm1495, %vm1496
    %v1498 = vsel %vm1497, %v1490, %v1494
    %v1499 = vand.u32 2147483647, %v1474
    %vm1500 = vcmp.eq.f32.partialorder %v1499, 8.507059e+37
    %v1501 = vand.u32 %v1474, 2147483648
    %v1502 = vor.u32 1.1754944e-38, %v1501
    %v1503 = vsel %vm1500, %v1502, %v1498
    %v1504 = vmul.f32 %v1468, %v1503
    %1505 = vrot.lane.b32.xlu0 %v1096, 48
    %v1506 = vpop.permute.xlu0 %1505
    %1507 = vrot.lane.b32.xlu0 %v1099, 48
    %v1508 = vpop.permute.xlu0 %1507
    %v1512 = vsel %vm280, %v1489, 0
    %v1515 = vsel %vm280, %v1504, 0
    %1517 = vmatpush.msra.mxu0 0.0
    %1518 = vmatpush.msra.mxu0 0.0
    %1519 = vmatpush.msra.mxu0 0.0
    %1520 = vmatpush.msra.mxu0 0.0
    %1521 = vmatpush.msra.mxu0 0.0
    %1522 = vmatpush.msra.mxu0 0.0
    %1523 = vmatpush.msra.mxu0 0.0
    %1524 = vmatpush.msra.mxu0 0.0
    %1525 = vmatpush.msra.mxu0 0.0
    %1526 = vmatpush.msra.mxu0 0.0
    %1527 = vmatpush.msra.mxu0 0.0
    %1528 = vmatpush.msra.mxu0 0.0
    %1529 = vmatpush.msra.mxu0 0.0
    %1530 = vmatpush.msra.mxu0 0.0
    %1531 = vmatpush.msra.mxu0 %v1508
    %1532 = vmatpush.msra.mxu0 %v1506
    %1533 = vmatmul.f32.gmra.mxu0 %v1512
    %v1534 = vpop.f32.mrf.mxu0
    %v1535 = vadd.f32 0.0, %v1534
    %1536 = vmatmul.f32.gmra.mxu0 %v1515
    %v1537 = vpop.f32.mrf.mxu0
    %v1538 = vadd.f32 0.0, %v1537
    %1539 = vdwg.mxu0
    %v1541 = vsel %vm244, %v1535, 0
    %v1544 = vsel %vm244, %v1538, 0
    %1546 = vmatpush.msra.mxu0 0.0
    %1547 = vmatpush.msra.mxu0 0.0
    %1548 = vmatpush.msra.mxu0 0.0
    %1549 = vmatpush.msra.mxu0 0.0
    %1550 = vmatpush.msra.mxu0 0.0
    %1551 = vmatpush.msra.mxu0 0.0
    %1552 = vmatpush.msra.mxu0 0.0
    %1553 = vmatpush.msra.mxu0 0.0
    %1554 = vmatpush.msra.mxu0 0.0
    %1555 = vmatpush.msra.mxu0 0.0
    %1556 = vmatpush.msra.mxu0 0.0
    %1557 = vmatpush.msra.mxu0 0.0
    %1558 = vmatpush.msra.mxu0 0.0
    %1559 = vmatpush.msra.mxu0 0.0
    %1560 = vmatpush.msra.mxu0 0.0
    %1561 = vmatpush.msra.mxu0 %v1104
    %1562 = vmatmul.f32.gmra.mxu0 %v1541
    %v1563 = vpop.f32.mrf.mxu0
    %v1564 = vadd.f32 0.0, %v1563
    %1565 = vmatmul.f32.gmra.mxu0 %v1544
    %v1566 = vpop.f32.mrf.mxu0
    %v1567 = vadd.f32 0.0, %v1566
    %1568 = vdwg.mxu0
    %v1569 = vadd.f32 %v1409, %v1564
    %v1570 = vadd.f32 %v1412, %v1567
    %1571 = vrot.lane.b32.xlu0 %v1096, 104
    %v1572 = vpop.permute.xlu0 %1571
    %1573 = vrot.lane.b32.xlu0 %v1099, 104
    %v1574 = vpop.permute.xlu0 %1573
    %1575 = vrot.lane.b32.xlu0 %v1096, 72
    %v1576 = vpop.permute.xlu0 %1575
    %1577 = vrot.lane.b32.xlu0 %v1099, 72
    %v1578 = vpop.permute.xlu0 %1577
    %v1579 = vsel %vm244, %v1572, 0
    %v1581 = vsel %vm244, %v1574, 0
    %v1583 = vsel %vm244, %v1576, 0
    %v1585 = vsel %vm244, %v1578, 0
    %1587 = vmatpush.xpose.msra.mxu0 0.0
    %1588 = vmatpush.xpose.msra.mxu0 0.0
    %1589 = vmatpush.xpose.msra.mxu0 0.0
    %1590 = vmatpush.xpose.msra.mxu0 0.0
    %1591 = vmatpush.xpose.msra.mxu0 0.0
    %1592 = vmatpush.xpose.msra.mxu0 0.0
    %1593 = vmatpush.xpose.msra.mxu0 0.0
    %1594 = vmatpush.xpose.msra.mxu0 0.0
    %1595 = vmatpush.xpose.msra.mxu0 0.0
    %1596 = vmatpush.xpose.msra.mxu0 0.0
    %1597 = vmatpush.xpose.msra.mxu0 0.0
    %1598 = vmatpush.xpose.msra.mxu0 0.0
    %1599 = vmatpush.xpose.msra.mxu0 0.0
    %1600 = vmatpush.xpose.msra.mxu0 0.0
    %1601 = vmatpush.xpose.msra.mxu0 %v1585
    %1602 = vmatpush.xpose.msra.mxu0 %v1583
    %1603 = vmatmul.f32.gmra.mxu0 %v1579
    %v1604 = vpop.f32.mrf.mxu0
    %v1605 = vadd.f32 0.0, %v1604
    %1606 = vmatmul.f32.gmra.mxu0 %v1581
    %v1607 = vpop.f32.mrf.mxu0
    %v1608 = vadd.f32 0.0, %v1607
    %1609 = vdwg.mxu0
    %v1610 = vmul.f32 %v1605, 0.35355338
    %v1611 = vmul.f32 %v1608, 0.35355338
    %v1612 = vadd.f32 %v1610, %v192
    %v1613 = vadd.f32 %v1611, %v193
    %v1614 = vsel %vm280, %v1612, -inf
    %1615 = vmax.xlane.f32.xlu0 %v1614
    %v1616 = vpop.xlane.xlu0 %1615
    %v1617 = vsel %vm280, %v1613, -inf
    %1618 = vmax.xlane.f32.xlu0 %v1617
    %v1619 = vpop.xlane.xlu0 %1618
    %v1620 = vsub.f32 %v1612, %v1616
    %v1621 = vsub.f32 %v1613, %v1619
    %v1622 = vmul.f32 %v1620, 1.442695
    %v1623 = vpow.pop %v1622
    %v1624 = vmul.f32 %v1621, 1.442695
    %v1625 = vpow.pop %v1624
    %v1626 = vsel %vm280, %v1623, 0.0
    %1627 = vadd.xlane.f32.xlu0 %v1626
    %v1628 = vpop.xlane.xlu0 %1627
    %v1629 = vsel %vm280, %v1625, 0.0
    %1630 = vadd.xlane.f32.xlu0 %v1629
    %v1631 = vpop.xlane.xlu0 %1630
    %v1632 = vrcp.pop %v1628
    %v1633 = vmul.f32 %v1628, %v1632
    %v1634 = vsub.f32 1.0, %v1633
    %v1635 = vmul.f32 %v1632, %v1634
    %v1636 = vadd.f32 %v1632, %v1635
    %vm1637 = vweird.f32 %v1628
    %vm1638 = vweird.f32 %v1632
    %vm1639 = vmor %vm1637, %vm1638
    %v1640 = vsel %vm1639, %v1632, %v1636
    %v1641 = vand.u32 2147483647, %v1628
    %vm1642 = vcmp.eq.f32.partialorder %v1641, 8.507059e+37
    %v1643 = vand.u32 %v1628, 2147483648
    %v1644 = vor.u32 1.1754944e-38, %v1643
    %v1645 = vsel %vm1642, %v1644, %v1640
    %v1646 = vmul.f32 %v1623, %v1645
    %v1647 = vrcp.pop %v1631
    %v1648 = vmul.f32 %v1631, %v1647
    %v1649 = vsub.f32 1.0, %v1648
    %v1650 = vmul.f32 %v1647, %v1649
    %v1651 = vadd.f32 %v1647, %v1650
    %vm1652 = vweird.f32 %v1631
    %vm1653 = vweird.f32 %v1647
    %vm1654 = vmor %vm1652, %vm1653
    %v1655 = vsel %vm1654, %v1647, %v1651
    %v1656 = vand.u32 2147483647, %v1631
    %vm1657 = vcmp.eq.f32.partialorder %v1656, 8.507059e+37
    %v1658 = vand.u32 %v1631, 2147483648
    %v1659 = vor.u32 1.1754944e-38, %v1658
    %v1660 = vsel %vm1657, %v1659, %v1655
    %v1661 = vmul.f32 %v1625, %v1660
    %1662 = vrot.lane.b32.xlu0 %v1096, 40
    %v1663 = vpop.permute.xlu0 %1662
    %1664 = vrot.lane.b32.xlu0 %v1099, 40
    %v1665 = vpop.permute.xlu0 %1664
    %v1669 = vsel %vm280, %v1646, 0
    %v1672 = vsel %vm280, %v1661, 0
    %1674 = vmatpush.msra.mxu0 0.0
    %1675 = vmatpush.msra.mxu0 0.0
    %1676 = vmatpush.msra.mxu0 0.0
    %1677 = vmatpush.msra.mxu0 0.0
    %1678 = vmatpush.msra.mxu0 0.0
    %1679 = vmatpush.msra.mxu0 0.0
    %1680 = vmatpush.msra.mxu0 0.0
    %1681 = vmatpush.msra.mxu0 0.0
    %1682 = vmatpush.msra.mxu0 0.0
    %1683 = vmatpush.msra.mxu0 0.0
    %1684 = vmatpush.msra.mxu0 0.0
    %1685 = vmatpush.msra.mxu0 0.0
    %1686 = vmatpush.msra.mxu0 0.0
    %1687 = vmatpush.msra.mxu0 0.0
    %1688 = vmatpush.msra.mxu0 %v1665
    %1689 = vmatpush.msra.mxu0 %v1663
    %1690 = vmatmul.f32.gmra.mxu0 %v1669
    %v1691 = vpop.f32.mrf.mxu0
    %v1692 = vadd.f32 0.0, %v1691
    %1693 = vmatmul.f32.gmra.mxu0 %v1672
    %v1694 = vpop.f32.mrf.mxu0
    %v1695 = vadd.f32 0.0, %v1694
    %1696 = vdwg.mxu0
    %v1698 = vsel %vm244, %v1692, 0
    %v1701 = vsel %vm244, %v1695, 0
    %1703 = vmatpush.msra.mxu0 0.0
    %1704 = vmatpush.msra.mxu0 0.0
    %1705 = vmatpush.msra.mxu0 0.0
    %1706 = vmatpush.msra.mxu0 0.0
    %1707 = vmatpush.msra.mxu0 0.0
    %1708 = vmatpush.msra.mxu0 0.0
    %1709 = vmatpush.msra.mxu0 0.0
    %1710 = vmatpush.msra.mxu0 0.0
    %1711 = vmatpush.msra.mxu0 0.0
    %1712 = vmatpush.msra.mxu0 0.0
    %1713 = vmatpush.msra.mxu0 0.0
    %1714 = vmatpush.msra.mxu0 0.0
    %1715 = vmatpush.msra.mxu0 0.0
    %1716 = vmatpush.msra.mxu0 0.0
    %1717 = vmatpush.msra.mxu0 0.0
    %1718 = vmatpush.msra.mxu0 %v1105
    %1719 = vmatmul.f32.gmra.mxu0 %v1698
    %v1720 = vpop.f32.mrf.mxu0
    %v1721 = vadd.f32 0.0, %v1720
    %1722 = vmatmul.f32.gmra.mxu0 %v1701
    %v1723 = vpop.f32.mrf.mxu0
    %v1724 = vadd.f32 0.0, %v1723
    %1725 = vdwg.mxu0
    %v1726 = vadd.f32 %v1569, %v1721
    %v1727 = vadd.f32 %v1570, %v1724
    %s1728 = scalar_lea.vmem [#allocation7], 1
    %v1729 = vld [vmem:[%s1728] sm:$0x1]
    %v1731 = vperm.slane %v1729, 0
    %v1733 = vadd.f32 %v1726, %v1731
    %v1734 = vadd.f32 %v1727, %v1731
    %s1735 = scalar_lea.vmem [#allocation11], 2
    %v1736 = vld [vmem:[%s1735] sm:$0x3]
    %v1737 = vadd.f32 %v1060, %v1733
    %v1738 = vadd.f32 %v1061, %v1734
    %v1739 = vsel %vm204, %v1737, 0.0
    %1740 = vadd.xlane.f32.xlu0 %v1739
    %v1741 = vpop.xlane.xlu0 %1740
    %v1742 = vsel %vm204, %v1738, 0.0
    %1743 = vadd.xlane.f32.xlu0 %v1742
    %v1744 = vpop.xlane.xlu0 %1743
    %v1745 = vmul.f32 %v1741, %v883
    %v1746 = vmul.f32 %v1744, %v883
    %v1747 = vsub.f32 %v1737, %v1745
    %v1748 = vsub.f32 %v1738, %v1746
    %v1749 = vmul.f32 %v1747, %v1747
    %v1750 = vmul.f32 %v1748, %v1748
    %v1751 = vsel %vm204, %v1749, 0.0
    %1752 = vadd.xlane.f32.xlu0 %v1751
    %v1753 = vpop.xlane.xlu0 %1752
    %v1754 = vsel %vm204, %v1750, 0.0
    %1755 = vadd.xlane.f32.xlu0 %v1754
    %v1756 = vpop.xlane.xlu0 %1755
    %v1757 = vmul.f32 %v1753, %v883
    %v1758 = vmul.f32 %v1756, %v883
    %v1759 = vadd.f32 %v1757, 1e-05
    %v1760 = vadd.f32 %v1758, 1e-05
    %v1761 = vrsqrt.pop %v1759
    %v1762 = vmul.f32 %v1761, %v1759
    %v1763 = vmul.f32 %v1762, %v1761
    %v1764 = vmul.f32 0.5, %v1763
    %v1765 = vsub.f32 1.5, %v1764
    %v1766 = vmul.f32 %v1761, %v1765
    %vm1767 = vweird.f32 %v1759
    %vm1768 = vweird.f32 %v1761
    %vm1769 = vmor %vm1767, %vm1768
    %v1770 = vsel %vm1769, %v1761, %v1766
    %v1771 = vrsqrt.pop %v1760
    %v1772 = vmul.f32 %v1771, %v1760
    %v1773 = vmul.f32 %v1772, %v1771
    %v1774 = vmul.f32 0.5, %v1773
    %v1775 = vsub.f32 1.5, %v1774
    %v1776 = vmul.f32 %v1771, %v1775
    %vm1777 = vweird.f32 %v1760
    %vm1778 = vweird.f32 %v1771
    %vm1779 = vmor %vm1777, %vm1778
    %v1780 = vsel %vm1779, %v1771, %v1776
    %v1781 = vmul.f32 %v1747, %v1770
    %v1782 = vmul.f32 %v1748, %v1780
    %v1783 = vperm.slane %v1736, 0
    %v1784 = vmul.f32 %v1781, %v1783
    %v1785 = vmul.f32 %v1782, %v1783
    %v1786 = vperm.slane %v1736, 1
    %v1787 = vadd.f32 %v1784, %v1786
    %v1788 = vadd.f32 %v1785, %v1786
    %s1789 = scalar_lea.vmem %s5, 32
    %v1790 = vld [vmem:[%s1789] sm:$0xff]
    %v1791 = vld [vmem:[%s1789 + $0x8] sm:$0xff]
    %v1792 = vld [vmem:[%s1789 + $0x10] sm:$0xff]
    %v1793 = vld [vmem:[%s1789 + $0x18] sm:$0xff]
    %s1794 = scalar_lea.vmem [#allocation8], 1
    %v1795 = vld [vmem:[%s1794] sm:$0x1]
    %v1797 = vperm.slane %v1795, 0
    %v1800 = vsel %vm204, %v1787, 0
    %v1803 = vsel %vm204, %v1788, 0
    %1805 = vmatpush.msra.mxu0 0.0
    %1806 = vmatpush.msra.mxu0 0.0
    %1807 = vmatpush.msra.mxu0 0.0
    %1808 = vmatpush.msra.mxu0 0.0
    %1809 = vmatpush.msra.mxu0 0.0
    %1810 = vmatpush.msra.mxu0 0.0
    %1811 = vmatpush.msra.mxu0 0.0
    %1812 = vmatpush.msra.mxu0 0.0
    %1813 = vmatpush.msra.mxu0 0.0
    %1814 = vmatpush.msra.mxu0 0.0
    %1815 = vmatpush.msra.mxu0 0.0
    %1816 = vmatpush.msra.mxu0 0.0
    %1817 = vmatpush.msra.mxu0 %v1793
    %1818 = vmatpush.msra.mxu0 %v1792
    %1819 = vmatpush.msra.mxu0 %v1791
    %1820 = vmatpush.msra.mxu0 %v1790
    %1821 = vmatmul.f32.gmra.mxu0 %v1800
    %v1822 = vpop.f32.mrf.mxu0
    %v1823 = vadd.f32 %v1797, %v1822
    %1824 = vmatmul.f32.gmra.mxu0 %v1803
    %v1825 = vpop.f32.mrf.mxu0
    %v1826 = vadd.f32 %v1797, %v1825
    %1827 = vdwg.mxu0
    %v1828 = vmax.f32 %v1823, 0.0
    %v1829 = vmax.f32 %v1826, 0.0
    %s1830 = scalar_lea.vmem %s7, 64
    %v1831 = vld [vmem:[%s1830] sm:$0xff]
    %v1832 = vld [vmem:[%s1830 + $0x8] sm:$0xff]
    %v1833 = vld [vmem:[%s1830 + $0x10] sm:$0xff]
    %v1834 = vld [vmem:[%s1830 + $0x18] sm:$0xff]
    %v1835 = vld [vmem:[%s1830 + $0x20] sm:$0xff]
    %v1836 = vld [vmem:[%s1830 + $0x28] sm:$0xff]
    %v1837 = vld [vmem:[%s1830 + $0x30] sm:$0xff]
    %v1838 = vld [vmem:[%s1830 + $0x38] sm:$0xff]
    %s1839 = scalar_lea.vmem [#allocation10], 1
    %v1840 = vld [vmem:[%s1839] sm:$0x1]
    %v1842 = vperm.slane %v1840, 0
    %v1845 = vsel %vm979, %v1828, 0
    %v1848 = vsel %vm979, %v1829, 0
    %1850 = vmatpush.msra.mxu0 0.0
    %1851 = vmatpush.msra.mxu0 0.0
    %1852 = vmatpush.msra.mxu0 0.0
    %1853 = vmatpush.msra.mxu0 0.0
    %1854 = vmatpush.msra.mxu0 0.0
    %1855 = vmatpush.msra.mxu0 0.0
    %1856 = vmatpush.msra.mxu0 0.0
    %1857 = vmatpush.msra.mxu0 0.0
    %1858 = vmatpush.msra.mxu0 %v1838
    %1859 = vmatpush.msra.mxu0 %v1837
    %1860 = vmatpush.msra.mxu0 %v1836
    %1861 = vmatpush.msra.mxu0 %v1835
    %1862 = vmatpush.msra.mxu0 %v1834
    %1863 = vmatpush.msra.mxu0 %v1833
    %1864 = vmatpush.msra.mxu0 %v1832
    %1865 = vmatpush.msra.mxu0 %v1831
    %1866 = vmatmul.f32.gmra.mxu0 %v1845
    %v1867 = vpop.f32.mrf.mxu0
    %v1868 = vadd.f32 %v1842, %v1867
    %1869 = vmatmul.f32.gmra.mxu0 %v1848
    %v1870 = vpop.f32.mrf.mxu0
    %v1871 = vadd.f32 %v1842, %v1870
    %1872 = vdwg.mxu0
    %s1873 = scalar_lea.vmem %s10, 2
    %v1874 = vld [vmem:[%s1873] sm:$0x3]
    %v1875 = vadd.f32 %v1787, %v1868
    %v1876 = vadd.f32 %v1788, %v1871
    %v1877 = vsel %vm204, %v1875, 0.0
    %1878 = vadd.xlane.f32.xlu0 %v1877
    %v1879 = vpop.xlane.xlu0 %1878
    %v1880 = vsel %vm204, %v1876, 0.0
    %1881 = vadd.xlane.f32.xlu0 %v1880
    %v1882 = vpop.xlane.xlu0 %1881
    %v1883 = vmul.f32 %v1879, %v883
    %v1884 = vmul.f32 %v1882, %v883
    %v1885 = vsub.f32 %v1875, %v1883
    %v1886 = vsub.f32 %v1876, %v1884
    %v1887 = vmul.f32 %v1885, %v1885
    %v1888 = vmul.f32 %v1886, %v1886
    %v1889 = vsel %vm204, %v1887, 0.0
    %1890 = vadd.xlane.f32.xlu0 %v1889
    %v1891 = vpop.xlane.xlu0 %1890
    %v1892 = vsel %vm204, %v1888, 0.0
    %1893 = vadd.xlane.f32.xlu0 %v1892
    %v1894 = vpop.xlane.xlu0 %1893
    %v1895 = vmul.f32 %v1891, %v883
    %v1896 = vmul.f32 %v1894, %v883
    %v1897 = vadd.f32 %v1895, 1e-05
    %v1898 = vadd.f32 %v1896, 1e-05
    %v1899 = vrsqrt.pop %v1897
    %v1900 = vmul.f32 %v1899, %v1897
    %v1901 = vmul.f32 %v1900, %v1899
    %v1902 = vmul.f32 0.5, %v1901
    %v1903 = vsub.f32 1.5, %v1902
    %v1904 = vmul.f32 %v1899, %v1903
    %vm1905 = vweird.f32 %v1897
    %vm1906 = vweird.f32 %v1899
    %vm1907 = vmor %vm1905, %vm1906
    %v1908 = vsel %vm1907, %v1899, %v1904
    %v1909 = vrsqrt.pop %v1898
    %v1910 = vmul.f32 %v1909, %v1898
    %v1911 = vmul.f32 %v1910, %v1909
    %v1912 = vmul.f32 0.5, %v1911
    %v1913 = vsub.f32 1.5, %v1912
    %v1914 = vmul.f32 %v1909, %v1913
    %vm1915 = vweird.f32 %v1898
    %vm1916 = vweird.f32 %v1909
    %vm1917 = vmor %vm1915, %vm1916
    %v1918 = vsel %vm1917, %v1909, %v1914
    %v1919 = vmul.f32 %v1885, %v1908
    %v1920 = vmul.f32 %v1886, %v1918
    %v1921 = vperm.slane %v1874, 0
    %v1922 = vmul.f32 %v1919, %v1921
    %v1923 = vmul.f32 %v1920, %v1921
    %v1924 = vperm.slane %v1874, 1
    %v1925 = vadd.f32 %v1922, %v1924
    %v1926 = vadd.f32 %v1923, %v1924
    %v1927 = vld [vmem:[#allocation13] sm:$0x3]
    %v1928 = vsel %vm204, %v1925, 0.0
    %1929 = vadd.xlane.f32.xlu0 %v1928
    %v1930 = vpop.xlane.xlu0 %1929
    %v1931 = vsel %vm204, %v1926, 0.0
    %1932 = vadd.xlane.f32.xlu0 %v1931
    %v1933 = vpop.xlane.xlu0 %1932
    %v1934 = vmul.f32 %v1930, %v883
    %v1935 = vmul.f32 %v1933, %v883
    %v1936 = vsub.f32 %v1925, %v1934
    %v1937 = vsub.f32 %v1926, %v1935
    %v1938 = vmul.f32 %v1936, %v1936
    %v1939 = vmul.f32 %v1937, %v1937
    %v1940 = vsel %vm204, %v1938, 0.0
    %1941 = vadd.xlane.f32.xlu0 %v1940
    %v1942 = vpop.xlane.xlu0 %1941
    %v1943 = vsel %vm204, %v1939, 0.0
    %1944 = vadd.xlane.f32.xlu0 %v1943
    %v1945 = vpop.xlane.xlu0 %1944
    %v1946 = vmul.f32 %v1942, %v883
    %v1947 = vmul.f32 %v1945, %v883
    %v1948 = vadd.f32 %v1946, 1e-05
    %v1949 = vadd.f32 %v1947, 1e-05
    %v1950 = vrsqrt.pop %v1948
    %v1951 = vmul.f32 %v1950, %v1948
    %v1952 = vmul.f32 %v1951, %v1950
    %v1953 = vmul.f32 0.5, %v1952
    %v1954 = vsub.f32 1.5, %v1953
    %v1955 = vmul.f32 %v1950, %v1954
    %vm1956 = vweird.f32 %v1948
    %vm1957 = vweird.f32 %v1950
    %vm1958 = vmor %vm1956, %vm1957
    %v1959 = vsel %vm1958, %v1950, %v1955
    %v1960 = vrsqrt.pop %v1949
    %v1961 = vmul.f32 %v1960, %v1949
    %v1962 = vmul.f32 %v1961, %v1960
    %v1963 = vmul.f32 0.5, %v1962
    %v1964 = vsub.f32 1.5, %v1963
    %v1965 = vmul.f32 %v1960, %v1964
    %vm1966 = vweird.f32 %v1949
    %vm1967 = vweird.f32 %v1960
    %vm1968 = vmor %vm1966, %vm1967
    %v1969 = vsel %vm1968, %v1960, %v1965
    %v1970 = vmul.f32 %v1936, %v1959
    %v1971 = vmul.f32 %v1937, %v1969
    %v1972 = vperm.slane %v1927, 0
    %v1973 = vmul.f32 %v1970, %v1972
    %v1974 = vmul.f32 %v1971, %v1972
    %v1975 = vperm.slane %v1927, 1
    %v1976 = vadd.f32 %v1973, %v1975
    %v1977 = vadd.f32 %v1974, %v1975
    %1978 = vst.msk [vmem:[#allocation14] sm:$0xff] %vm204, %v1976
    %1979 = vst.msk [vmem:[#allocation14 + $0x8] sm:$0xff] %vm204, %v1977
    // Predicated region
    $region78: #{transformer_encoder_forward.1} parent=1 // pred_check
      _
    $region79: #{transformer_encoder_forward.1} parent=1 // pred_check_branch
      %1981 = sbr.rel (0) target = $region81
    $region80: #{transformer_encoder_forward.1} parent=1 // pred_region
      %1983 = vsyncadd [#allocation4], 0
      %s1984 = sshll.u32 [#allocation14], 4
      %s1985 = int_to_ptr.vmem [resolvable:$true] %s1984
      %s1986 = sshll.u32 %s12, 4
      %s1987 = int_to_ptr.hbm [resolvable:$true] %s1986
      %1992 = dma.vmem_to_hbm [thread:$0]  %s1985, 256, %s1987, [#allocation4], 128, 128, 8
    $region81: #{transformer_encoder_forward.1} parent=1 // pred_fallthru
      _
    // Predicated region
    $region82: #{transformer_encoder_forward.1} parent=1 // pred_check
      _
    $region83: #{transformer_encoder_forward.1} parent=1 // pred_check_branch
      %1994 = sbr.rel (0) target = $region85
    $region84: #{transformer_encoder_forward.1} parent=1 // pred_region
      %1996 = dma.done [#allocation4], 256
    $region85: #{transformer_encoder_forward.1} parent=1 // pred_fallthru
      _
    %1997 = vsyncpa [#allocation3], 1
    %1998 = vsyncpa [#allocation6], 1
    %1999 = vsyncpa [#allocation9], 1
    %2000 = vsyncpa [#allocation12], 1
    %2001 = vsyncpa [#allocation4], 1

</llo_original>
